<compile_context>
chip_gen: v6e
topology: v6e:2x2x1
jax: 0.10.0
libtpu: 0.0.40
codegen_flags: <defaults>
</compile_context>

<pallas_src>
import jax
import jax.numpy as jnp
from jax.experimental import pallas as pl
from jax.experimental.pallas import tpu as pltpu

PACK = 8                          # logical rows packed per physical row (sublanes)
MAX_LOGICAL_ROWS_PER_STEP = 2048  # logical rows per grid step (=> 256 packed rows)


def _round_up(n, m):
    return ((n + m - 1) // m) * m


def _mlp_kernel(x_ref, w1_ref, b1_ref, w2_ref, b2_ref, w3_ref, b3_ref, o_ref):
    """Fused 3-layer MLP on one row-packed tile.

    All operands are lane-dense (last dims are 8x the logical feature dims),
    so every vld/vst uses the full 128-lane vreg and the matmuls run at
    MXU-friendly K/N.
    """
    # In-kernel f32 -> bf16 cast (free VPU op; avoids a separate wrapper-side
    # cast pass that would add an extra full HBM read+write of x).
    x = x_ref[...].astype(jnp.bfloat16)

    # Layer 1: Linear (bf16 MXU inputs, f32 accumulate) + f32 bias/ReLU epilogue.
    h1 = jnp.dot(x, w1_ref[...], preferred_element_type=jnp.float32)
    h1 = jnp.maximum(h1 + b1_ref[...], 0.0)
    # dropout(p=0.5, training=False) -> identity (eval mode)

    # Layer 2
    h2 = jnp.dot(h1.astype(jnp.bfloat16), w2_ref[...],
                 preferred_element_type=jnp.float32)
    h2 = jnp.maximum(h2 + b2_ref[...], 0.0)
    # dropout(p=0.5, training=False) -> identity (eval mode)

    # Layer 3 (no activation).
    out = jnp.dot(h2.astype(jnp.bfloat16), w3_ref[...],
                  preferred_element_type=jnp.float32)
    o_ref[...] = (out + b3_ref[...]).astype(o_ref.dtype)


def discriminator_forward(x, packed_params, *,
                          max_logical_rows_per_step=MAX_LOGICAL_ROWS_PER_STEP):
    """Forward pass. x: [N, in_channels] float32; packed_params from pack_params()."""
    w1, b1 = packed_params["w1"], packed_params["b1"]
    w2, b2 = packed_params["w2"], packed_params["b2"]
    w3, b3 = packed_params["w3"], packed_params["b3"]
    pack = packed_params["pack"]
    in_ch = packed_params["in_channels"]
    out_ch = packed_params["out_channels"]

    N = x.shape[0]
    assert x.shape[1] == in_ch

    # Pad N to a multiple of the packing factor only when needed (no extra HBM
    # pass when N % 8 == 0, as in the demo).
    n_pad = _round_up(N, pack)
    if n_pad != N:
        x = jnp.pad(x, ((0, n_pad - N), (0, 0)))
    n_pack = n_pad // pack

    # Row-packing: (n_pad, in_ch) -> (n_pack, pack*in_ch). Contiguous row-major
    # reshape -> no data movement.
    xp = x.reshape(n_pack, pack * in_ch)

    # Adaptive row tile (multiple of 8 sublanes). The last grid block may be
    # ragged: Pallas masks out-of-bounds output rows, and since rows are
    # independent the garbage in padded input rows cannot leak into valid rows.
    max_tile = max(8, (max_logical_rows_per_step // pack) // 8 * 8)
    num_steps = pl.cdiv(n_pack, max_tile)
    tile_rows = min(_round_up(pl.cdiv(n_pack, num_steps), 8), max_tile)
    grid = (pl.cdiv(n_pack, tile_rows),)

    in_p, h1_p = w1.shape
    h2_p = w2.shape[1]
    out_p = w3.shape[1]

    # Weights / biases: full-array blocks, constant block index -> VMEM-resident
    # across grid steps (fetched once).
    resident = lambda a: pl.BlockSpec(a.shape, lambda i: (0,) * a.ndim)

    flops = 2 * n_pack * (in_p * h1_p + h1_p * h2_p + h2_p * out_p)
    bytes_accessed = (
        xp.size * 4                                                       # f32 x read
        + sum(int(a.size) * a.dtype.itemsize for a in (w1, b1, w2, b2, w3, b3))
        + n_pack * out_p * 4                                              # f32 out write
    )

    out = pl.pallas_call(
        _mlp_kernel,
        out_shape=jax.ShapeDtypeStruct((n_pack, out_p), jnp.float32),
        grid=grid,
        in_specs=[
            pl.BlockSpec((tile_rows, in_p), lambda i: (i, 0)),  # x: row-tiled
            resident(w1), resident(b1),
            resident(w2), resident(b2),
            resident(w3), resident(b3),
        ],
        out_specs=pl.BlockSpec((tile_rows, out_p), lambda i: (i, 0)),
        compiler_params=pltpu.CompilerParams(
            # Row tiles are independent -> multi-TC chips may shard grid steps.
            # TODO(synk): consider pltpu.CORE_PARALLEL if v7x profiling shows
            # both tiles landing on one TensorCore.
            dimension_semantics=("parallel",),
            vmem_limit_bytes=32 * 1024 * 1024,
        ),
        cost_estimate=pl.CostEstimate(
            flops=flops, transcendentals=0, bytes_accessed=bytes_accessed),
    )(xp, w1, b1, w2, b2, w3, b3)

    # Unpack: (n_pack, pack*out_ch) row-major == (n_pad, out_ch). Free reshape.
    out = out.reshape(n_pad, out_ch)
    return out[:N] if n_pad != N else out


def init_params(key, in_channels, hidden1, hidden2, out_channels):
    """torch.nn.Linear-style init (uniform +/- 1/sqrt(fan_in)).
    Weights stored transposed [in, out] in f32; biases [1, out] in f32."""
    ks = jax.random.split(key, 6)

    def lin(kw, kb, fan_in, fan_out):
        bound = 1.0 / jnp.sqrt(fan_in)
        w = jax.random.uniform(kw, (fan_in, fan_out), jnp.float32, -bound, bound)
        b = jax.random.uniform(kb, (1, fan_out), jnp.float32, -bound, bound)
        return w, b

    w1, b1 = lin(ks[0], ks[1], in_channels, hidden1)
    w2, b2 = lin(ks[2], ks[3], hidden1, hidden2)
    w3, b3 = lin(ks[4], ks[5], hidden2, out_channels)
    return {"w1": w1, "b1": b1, "w2": w2, "b2": b2, "w3": w3, "b3": b3}


def _block_diag(w, pack):
    """Block-diagonal replication: (in, out) -> (pack*in, pack*out)."""
    fan_in, fan_out = w.shape
    eye = jnp.eye(pack, dtype=w.dtype)
    bd = jnp.einsum("pq,io->piqo", eye, w)
    return bd.reshape(pack * fan_in, pack * fan_out)


def pack_params(params, *, pack=PACK):
    """One-time (init-time) packing: block-diagonal bf16 weights + tiled f32
    biases so `pack` logical rows share one lane-dense physical row.
    bf16 weight storage is an explicit precision choice (MXU-native inputs,
    f32 accumulation); the ~0.4% relative rounding is inconsequential for a
    GAN discriminator."""
    return {
        "w1": _block_diag(params["w1"].astype(jnp.bfloat16), pack),
        "w2": _block_diag(params["w2"].astype(jnp.bfloat16), pack),
        "w3": _block_diag(params["w3"].astype(jnp.bfloat16), pack),
        "b1": jnp.tile(params["b1"], (1, pack)),
        "b2": jnp.tile(params["b2"], (1, pack)),
        "b3": jnp.tile(params["b3"], (1, pack)),
        "pack": pack,
        "in_channels": params["w1"].shape[0],
        "out_channels": params["w3"].shape[1],
    }


def _reference_forward(x, params):
    """Plain-JAX reference mirroring the kernel's dtype strategy
    (bf16 matmul inputs, f32 accumulation, eval-mode dropout = identity)."""
    h1 = jnp.dot(x.astype(jnp.bfloat16), params["w1"].astype(jnp.bfloat16),
                 preferred_element_type=jnp.float32)
    h1 = jnp.maximum(h1 + params["b1"], 0.0)
    h2 = jnp.dot(h1.astype(jnp.bfloat16), params["w2"].astype(jnp.bfloat16),
                 preferred_element_type=jnp.float32)
    h2 = jnp.maximum(h2 + params["b2"], 0.0)
    out = jnp.dot(h2.astype(jnp.bfloat16), params["w3"].astype(jnp.bfloat16),
                  preferred_element_type=jnp.float32)
    return out + params["b3"]


if __name__ == "__main__":
    key = jax.random.PRNGKey(0)
    k_x, k_p = jax.random.split(key)

    # Small shapes consistent with the module's forward: x is [N, in_channels].
    # N=600 -> 75 packed rows, which with max_logical_rows_per_step=256 gives a
    # 3-step grid whose last block is ragged (exercises adaptive tiling + the
    # masked last-block path).
    N, in_channels, hidden1, hidden2, out_channels = 600, 32, 64, 32, 16

    x = jax.random.normal(k_x, (N, in_channels), dtype=jnp.float32)
    params = init_params(k_p, in_channels, hidden1, hidden2, out_channels)
    packed = pack_params(params)

    out = discriminator_forward(x, packed, max_logical_rows_per_step=256)
    out = jax.block_until_ready(out)

    ref = _reference_forward(x, params)
    assert out.shape == (N, out_channels)
    assert jnp.allclose(out, ref, atol=1e-2, rtol=1e-2), float(
        jnp.max(jnp.abs(out - ref)))

    print("KERNEL_OK")
</pallas_src>

<mosaic_0001>
module attributes {stable_mosaic.version = 11 : i64} {
  func.func @_mlp_kernel(%arg0: i32, %arg1: memref<32x256xf32, #tpu.memory_space<vmem>>, %arg2: memref<256x512xbf16, #tpu.memory_space<vmem>>, %arg3: memref<1x512xf32, #tpu.memory_space<vmem>>, %arg4: memref<512x256xbf16, #tpu.memory_space<vmem>>, %arg5: memref<1x256xf32, #tpu.memory_space<vmem>>, %arg6: memref<256x128xbf16, #tpu.memory_space<vmem>>, %arg7: memref<1x128xf32, #tpu.memory_space<vmem>>, %arg8: memref<32x128xf32, #tpu.memory_space<vmem>>) attributes {dimension_semantics = [#tpu.dimension_semantics<parallel>], iteration_bounds = array<i64: 3>, scalar_prefetch = 0 : i64, scratch_operands = 0 : i64, tpu.core_type = #tpu.core_type<tc>, window_params = [{transform_indices = @transform_0, window_bounds = array<i64: 32, 256>}, {pipeline_mode = #tpu.pipeline_mode<synchronous>, transform_indices = @transform_1, window_bounds = array<i64: 256, 512>}, {pipeline_mode = #tpu.pipeline_mode<synchronous>, transform_indices = @transform_2, window_bounds = array<i64: 1, 512>}, {pipeline_mode = #tpu.pipeline_mode<synchronous>, transform_indices = @transform_3, window_bounds = array<i64: 512, 256>}, {pipeline_mode = #tpu.pipeline_mode<synchronous>, transform_indices = @transform_4, window_bounds = array<i64: 1, 256>}, {pipeline_mode = #tpu.pipeline_mode<synchronous>, transform_indices = @transform_5, window_bounds = array<i64: 256, 128>}, {pipeline_mode = #tpu.pipeline_mode<synchronous>, transform_indices = @transform_6, window_bounds = array<i64: 1, 128>}, {transform_indices = @transform_7, window_bounds = array<i64: 32, 128>}]} {
    %c0 = arith.constant 0 : index
    %c0_0 = arith.constant 0 : index
    %0 = vector.load %arg1[%c0, %c0_0] : memref<32x256xf32, #tpu.memory_space<vmem>>, vector<32x256xf32>
    %1 = arith.truncf %0 : vector<32x256xf32> to vector<32x256xbf16>
    %c0_1 = arith.constant 0 : index
    %c0_2 = arith.constant 0 : index
    %2 = vector.load %arg2[%c0_1, %c0_2] : memref<256x512xbf16, #tpu.memory_space<vmem>>, vector<256x512xbf16>
    %cst = arith.constant dense<0.000000e+00> : vector<32x512xf32>
    %3 = tpu.matmul %1, %2, %cst {dimension_numbers = #tpu.dot_dimension_numbers<[1], [0], [0], [1], [0, 0, 1, 1], [], []>} : vector<32x256xbf16>, vector<256x512xbf16>, vector<32x512xf32> -> vector<32x512xf32>
    %c0_3 = arith.constant 0 : index
    %c0_4 = arith.constant 0 : index
    %4 = vector.load %arg3[%c0_3, %c0_4] : memref<1x512xf32, #tpu.memory_space<vmem>>, vector<1x512xf32>
    %5 = vector.broadcast %4 : vector<1x512xf32> to vector<32x512xf32>
    %6 = arith.addf %3, %5 : vector<32x512xf32>
    %cst_5 = arith.constant 0.000000e+00 : f32
    %7 = vector.broadcast %cst_5 : f32 to vector<32x512xf32>
    %8 = arith.maximumf %6, %7 : vector<32x512xf32>
    %9 = arith.truncf %8 : vector<32x512xf32> to vector<32x512xbf16>
    %c0_6 = arith.constant 0 : index
    %c0_7 = arith.constant 0 : index
    %10 = vector.load %arg4[%c0_6, %c0_7] : memref<512x256xbf16, #tpu.memory_space<vmem>>, vector<512x256xbf16>
    %cst_8 = arith.constant dense<0.000000e+00> : vector<32x256xf32>
    %11 = tpu.matmul %9, %10, %cst_8 {dimension_numbers = #tpu.dot_dimension_numbers<[1], [0], [0], [1], [0, 0, 1, 1], [], []>} : vector<32x512xbf16>, vector<512x256xbf16>, vector<32x256xf32> -> vector<32x256xf32>
    %c0_9 = arith.constant 0 : index
    %c0_10 = arith.constant 0 : index
    %12 = vector.load %arg5[%c0_9, %c0_10] : memref<1x256xf32, #tpu.memory_space<vmem>>, vector<1x256xf32>
    %13 = vector.broadcast %12 : vector<1x256xf32> to vector<32x256xf32>
    %14 = arith.addf %11, %13 : vector<32x256xf32>
    %cst_11 = arith.constant 0.000000e+00 : f32
    %15 = vector.broadcast %cst_11 : f32 to vector<32x256xf32>
    %16 = arith.maximumf %14, %15 : vector<32x256xf32>
    %17 = arith.truncf %16 : vector<32x256xf32> to vector<32x256xbf16>
    %c0_12 = arith.constant 0 : index
    %c0_13 = arith.constant 0 : index
    %18 = vector.load %arg6[%c0_12, %c0_13] : memref<256x128xbf16, #tpu.memory_space<vmem>>, vector<256x128xbf16>
    %cst_14 = arith.constant dense<0.000000e+00> : vector<32x128xf32>
    %19 = tpu.matmul %17, %18, %cst_14 {dimension_numbers = #tpu.dot_dimension_numbers<[1], [0], [0], [1], [0, 0, 1, 1], [], []>} : vector<32x256xbf16>, vector<256x128xbf16>, vector<32x128xf32> -> vector<32x128xf32>
    %c0_15 = arith.constant 0 : index
    %c0_16 = arith.constant 0 : index
    %20 = vector.load %arg7[%c0_15, %c0_16] : memref<1x128xf32, #tpu.memory_space<vmem>>, vector<1x128xf32>
    %21 = vector.broadcast %20 : vector<1x128xf32> to vector<32x128xf32>
    %22 = arith.addf %19, %21 : vector<32x128xf32>
    %c0_17 = arith.constant 0 : index
    %c0_18 = arith.constant 0 : index
    %23 = vector.load %arg8[%c0_17, %c0_18] : memref<32x128xf32, #tpu.memory_space<vmem>>, vector<32x128xf32>
    tpu.vector_store %arg8[%c0_17, %c0_18], %22 {strides = array<i32>} : memref<32x128xf32, #tpu.memory_space<vmem>>, vector<32x128xf32>,
    return
  }
  func.func @transform_0(%arg0: i32) -> (i32, i32) {
    %c0_i32 = arith.constant 0 : i32
    %c0_i32_0 = arith.constant 0 : i32
    return %arg0, %c0_i32 : i32, i32
  }
  func.func @transform_1(%arg0: i32) -> (i32, i32) {
    %c0_i32 = arith.constant 0 : i32
    %c0_i32_0 = arith.constant 0 : i32
    %c0_i32_1 = arith.constant 0 : i32
    return %c0_i32, %c0_i32_0 : i32, i32
  }
  func.func @transform_2(%arg0: i32) -> (i32, i32) {
    %c0_i32 = arith.constant 0 : i32
    %c0_i32_0 = arith.constant 0 : i32
    %c0_i32_1 = arith.constant 0 : i32
    return %c0_i32, %c0_i32_0 : i32, i32
  }
  func.func @transform_3(%arg0: i32) -> (i32, i32) {
    %c0_i32 = arith.constant 0 : i32
    %c0_i32_0 = arith.constant 0 : i32
    %c0_i32_1 = arith.constant 0 : i32
    return %c0_i32, %c0_i32_0 : i32, i32
  }
  func.func @transform_4(%arg0: i32) -> (i32, i32) {
    %c0_i32 = arith.constant 0 : i32
    %c0_i32_0 = arith.constant 0 : i32
    %c0_i32_1 = arith.constant 0 : i32
    return %c0_i32, %c0_i32_0 : i32, i32
  }
  func.func @transform_5(%arg0: i32) -> (i32, i32) {
    %c0_i32 = arith.constant 0 : i32
    %c0_i32_0 = arith.constant 0 : i32
    %c0_i32_1 = arith.constant 0 : i32
    return %c0_i32, %c0_i32_0 : i32, i32
  }
  func.func @transform_6(%arg0: i32) -> (i32, i32) {
    %c0_i32 = arith.constant 0 : i32
    %c0_i32_0 = arith.constant 0 : i32
    %c0_i32_1 = arith.constant 0 : i32
    return %c0_i32, %c0_i32_0 : i32, i32
  }
  func.func @transform_7(%arg0: i32) -> (i32, i32) {
    %c0_i32 = arith.constant 0 : i32
    %c0_i32_0 = arith.constant 0 : i32
    return %arg0, %c0_i32 : i32, i32
  }
}

</mosaic_0001>

<llo_original>
// kernel: tpu_custom_call.1
$region0: #{tpu_custom_call.1}
  #allocation0 [shape = 'u32[]', space=smem, size = 0x4, offset = 0x4, fixed_abs, tag = 'smem constant byte address 0x4 - core index']
  #allocation1 [shape = 'u32[144,128]{1,0:T(1,128)}', space=vmem, size = 0x12000, scoped, tag = 'internal scratch']
  %s0 = inlined_call_operand.hbm [shape: f32[75,256], index: 0, kind: input, shape index: {}]
  %s1 = inlined_call_operand.hbm [shape: bf16[256,512], index: 1, kind: input, shape index: {}]
  %s2 = inlined_call_operand.hbm [shape: f32[1,512], index: 2, kind: input, shape index: {}]
  %s3 = inlined_call_operand.hbm [shape: bf16[512,256], index: 3, kind: input, shape index: {}]
  %s4 = inlined_call_operand.vmem [shape: f32[1,256], index: 4, kind: input, shape index: {}]
  %s5 = inlined_call_operand.hbm [shape: bf16[256,128], index: 5, kind: input, shape index: {}]
  %s6 = inlined_call_operand.vmem [shape: f32[1,128], index: 6, kind: input, shape index: {}]
  %s7 = inlined_call_operand.hbm [shape: f32[75,128], index: 7, kind: output, shape index: {}]
  %s8 = sld [smem:[#allocation0]]
  $region81: #{tpu_custom_call.1} parent=0
    _
  %s10 = ssub.s32 1, %s8
  %s11 = scalar_select 0, %s10, %s8
  $region1: #{tpu_custom_call.1} parent=0
    #allocation2 [shape = 'u8[65536]{0}', space=vmem, size = 0x10000, scoped, tag = 'input window, operand 0']
    #allocation3 [shape = 's32[2]{0}', space=sflag, size = 0x8, scoped, tag = 'scoped memory for tpu_custom_call.1']
    #allocation4 [shape = 's32[2]{0}', space=sflag, size = 0x8, scoped, tag = 'scoped memory for tpu_custom_call.1']
    #allocation5 [shape = 'u8[262144]{0}', space=vmem, size = 0x40000, scoped, tag = 'input window, operand 1, single buffered']
    #allocation6 [shape = 's32[1]{0}', space=sflag, size = 0x4, scoped, tag = 'scoped memory for tpu_custom_call.1']
    #allocation7 [shape = 'u8[2048]{0}', space=vmem, size = 0x800, scoped, tag = 'input window, operand 2, single buffered']
    #allocation8 [shape = 'u8[262144]{0}', space=vmem, size = 0x40000, scoped, tag = 'input window, operand 3, single buffered']
    #allocation9 [shape = 's32[1]{0}', space=sflag, size = 0x4, scoped, tag = 'scoped memory for tpu_custom_call.1']
    #allocation10 [shape = 'u8[65536]{0}', space=vmem, size = 0x10000, scoped, tag = 'input window, operand 5, single buffered']
    #allocation11 [shape = 'u8[32768]{0}', space=vmem, size = 0x8000, scoped, tag = 'output window, operand 0']
    %12 = vsyncpa [#allocation3], 0
    %s13 = scalar_lea.sflag [#allocation3], 1
    %14 = vsyncpa %s13, 0
    %15 = vsyncpa [#allocation6], 0
    %16 = vsyncpa [#allocation9], 0
    %17 = vsyncpa [#allocation4], 0
    %s18 = scalar_lea.sflag [#allocation4], 1
    %19 = vsyncpa %s18, 0
    loop: start=0, step=1, limit=5
    $region2: #{tpu_custom_call.1} parent=1 // loop_pre_header
      _
    $region3: #{tpu_custom_call.1} parent=1 // loop_header
      %s21 = sphi 0, %s25
      %p22 = scmp.ge.s32.totalorder %s21, 5
      %s31 = sphi 0, %s33
      %s34 = sphi 0, %s31
      %s35 = sphi 0, %s34
      %s51 = sphi 0, %s35
      %s55 = sphi 0, %s55
      %s57 = sphi 0, %s55
      %s58 = sphi 0, %s57
      %s72 = sphi 0, %s58
      %s76 = sphi 0, %s76
      %s78 = sphi 0, %s76
      %s79 = sphi 0, %s78
      %s93 = sphi 0, %s79
      %s97 = sphi 0, %s97
      %s99 = sphi 0, %s97
      %s100 = sphi 0, %s99
      %s114 = sphi 0, %s100
      %s118 = sphi 0, %s118
      %s120 = sphi 0, %s118
      %s121 = sphi 0, %s120
      %s135 = sphi 0, %s121
      %s139 = sphi 0, %s139
      %s141 = sphi 0, %s139
      %s142 = sphi 0, %s141
      %s156 = sphi 0, %s142
      %s160 = sphi 0, %s160
      %s162 = sphi 0, %s160
      %s163 = sphi 0, %s162
      %s177 = sphi 0, %s163
      %s183 = sphi 0, %s185
      %s186 = sphi 0, %s183
      %s187 = sphi 0, %s186
      %s203 = sphi 0, %s187
    $region4: #{tpu_custom_call.1} parent=1 // loop_header_branch
      %24 = sbr.rel (%p22) target = $region8
    $region5: #{tpu_custom_call.1} parent=1 // loop_body
      %s26 = ssub.s32 %s21, 1
      %s27 = ssub.s32 %s21, 2
      %s28 = sadd.s32 %s21, 1
      %s29 = ssub.s32 %s21, %s28
      %p30 = scmp.eq.s32.totalorder %s29, 0
      %s32 = sadd.s32 %s31, 1
      %s33 = scalar_select %p30, %s31, %s32
      %p36 = pneg %p30
      %p37 = scmp.eq.s32.totalorder %s21, 2
      %p38 = por %p36, %p37
      %p39 = scmp.ne.s32.totalorder %s31, %s34
      %p40 = scmp.eq.s32.totalorder %s21, 0
      %p41 = por %p39, %p40
      %p42 = scmp.ne.s32.totalorder %s31, %s34
      %p43 = scmp.eq.s32.totalorder %s26, 2
      %p44 = por %p42, %p43
      %p45 = scmp.ne.s32.totalorder %s34, %s35
      %p46 = scmp.eq.s32.totalorder %s26, 0
      %p47 = por %p45, %p46
      %p48 = scmp.ne.s32.totalorder %s34, %s35
      %p49 = scmp.eq.s32.totalorder %s27, 2
      %p50 = por %p48, %p49
      %p52 = scmp.ne.s32.totalorder %s35, %s51
      %p53 = scmp.eq.s32.totalorder %s27, 0
      %p54 = por %p52, %p53
      %s56 = sadd.s32 %s55, 1
      %p59 = scmp.eq.s32.totalorder %s21, 2
      %p60 = scmp.ne.s32.totalorder %s55, %s57
      %p61 = scmp.eq.s32.totalorder %s21, 0
      %p62 = por %p60, %p61
      %p63 = scmp.ne.s32.totalorder %s55, %s57
      %p64 = scmp.eq.s32.totalorder %s26, 2
      %p65 = por %p63, %p64
      %p66 = scmp.ne.s32.totalorder %s57, %s58
      %p67 = scmp.eq.s32.totalorder %s26, 0
      %p68 = por %p66, %p67
      %p69 = scmp.ne.s32.totalorder %s57, %s58
      %p70 = scmp.eq.s32.totalorder %s27, 2
      %p71 = por %p69, %p70
      %p73 = scmp.ne.s32.totalorder %s58, %s72
      %p74 = scmp.eq.s32.totalorder %s27, 0
      %p75 = por %p73, %p74
      %s77 = sadd.s32 %s76, 1
      %p80 = scmp.eq.s32.totalorder %s21, 2
      %p81 = scmp.ne.s32.totalorder %s76, %s78
      %p82 = scmp.eq.s32.totalorder %s21, 0
      %p83 = por %p81, %p82
      %p84 = scmp.ne.s32.totalorder %s76, %s78
      %p85 = scmp.eq.s32.totalorder %s26, 2
      %p86 = por %p84, %p85
      %p87 = scmp.ne.s32.totalorder %s78, %s79
      %p88 = scmp.eq.s32.totalorder %s26, 0
      %p89 = por %p87, %p88
      %p90 = scmp.ne.s32.totalorder %s78, %s79
      %p91 = scmp.eq.s32.totalorder %s27, 2
      %p92 = por %p90, %p91
      %p94 = scmp.ne.s32.totalorder %s79, %s93
      %p95 = scmp.eq.s32.totalorder %s27, 0
      %p96 = por %p94, %p95
      %s98 = sadd.s32 %s97, 1
      %p101 = scmp.eq.s32.totalorder %s21, 2
      %p102 = scmp.ne.s32.totalorder %s97, %s99
      %p103 = scmp.eq.s32.totalorder %s21, 0
      %p104 = por %p102, %p103
      %p105 = scmp.ne.s32.totalorder %s97, %s99
      %p106 = scmp.eq.s32.totalorder %s26, 2
      %p107 = por %p105, %p106
      %p108 = scmp.ne.s32.totalorder %s99, %s100
      %p109 = scmp.eq.s32.totalorder %s26, 0
      %p110 = por %p108, %p109
      %p111 = scmp.ne.s32.totalorder %s99, %s100
      %p112 = scmp.eq.s32.totalorder %s27, 2
      %p113 = por %p111, %p112
      %p115 = scmp.ne.s32.totalorder %s100, %s114
      %p116 = scmp.eq.s32.totalorder %s27, 0
      %p117 = por %p115, %p116
      %s119 = sadd.s32 %s118, 1
      %p122 = scmp.eq.s32.totalorder %s21, 2
      %p123 = scmp.ne.s32.totalorder %s118, %s120
      %p124 = scmp.eq.s32.totalorder %s21, 0
      %p125 = por %p123, %p124
      %p126 = scmp.ne.s32.totalorder %s118, %s120
      %p127 = scmp.eq.s32.totalorder %s26, 2
      %p128 = por %p126, %p127
      %p129 = scmp.ne.s32.totalorder %s120, %s121
      %p130 = scmp.eq.s32.totalorder %s26, 0
      %p131 = por %p129, %p130
      %p132 = scmp.ne.s32.totalorder %s120, %s121
      %p133 = scmp.eq.s32.totalorder %s27, 2
      %p134 = por %p132, %p133
      %p136 = scmp.ne.s32.totalorder %s121, %s135
      %p137 = scmp.eq.s32.totalorder %s27, 0
      %p138 = por %p136, %p137
      %s140 = sadd.s32 %s139, 1
      %p143 = scmp.eq.s32.totalorder %s21, 2
      %p144 = scmp.ne.s32.totalorder %s139, %s141
      %p145 = scmp.eq.s32.totalorder %s21, 0
      %p146 = por %p144, %p145
      %p147 = scmp.ne.s32.totalorder %s139, %s141
      %p148 = scmp.eq.s32.totalorder %s26, 2
      %p149 = por %p147, %p148
      %p150 = scmp.ne.s32.totalorder %s141, %s142
      %p151 = scmp.eq.s32.totalorder %s26, 0
      %p152 = por %p150, %p151
      %p153 = scmp.ne.s32.totalorder %s141, %s142
      %p154 = scmp.eq.s32.totalorder %s27, 2
      %p155 = por %p153, %p154
      %p157 = scmp.ne.s32.totalorder %s142, %s156
      %p158 = scmp.eq.s32.totalorder %s27, 0
      %p159 = por %p157, %p158
      %s161 = sadd.s32 %s160, 1
      %p164 = scmp.eq.s32.totalorder %s21, 2
      %p165 = scmp.ne.s32.totalorder %s160, %s162
      %p166 = scmp.eq.s32.totalorder %s21, 0
      %p167 = por %p165, %p166
      %p168 = scmp.ne.s32.totalorder %s160, %s162
      %p169 = scmp.eq.s32.totalorder %s26, 2
      %p170 = por %p168, %p169
      %p171 = scmp.ne.s32.totalorder %s162, %s163
      %p172 = scmp.eq.s32.totalorder %s26, 0
      %p173 = por %p171, %p172
      %p174 = scmp.ne.s32.totalorder %s162, %s163
      %p175 = scmp.eq.s32.totalorder %s27, 2
      %p176 = por %p174, %p175
      %p178 = scmp.ne.s32.totalorder %s163, %s177
      %p179 = scmp.eq.s32.totalorder %s27, 0
      %p180 = por %p178, %p179
      %s181 = ssub.s32 %s21, %s28
      %p182 = scmp.eq.s32.totalorder %s181, 0
      %s184 = sadd.s32 %s183, 1
      %s185 = scalar_select %p182, %s183, %s184
      %p188 = pneg %p182
      %p189 = scmp.eq.s32.totalorder %s21, 2
      %p190 = por %p188, %p189
      %p191 = scmp.ne.s32.totalorder %s183, %s186
      %p192 = scmp.eq.s32.totalorder %s21, 0
      %p193 = por %p191, %p192
      %p194 = scmp.ne.s32.totalorder %s183, %s186
      %p195 = scmp.eq.s32.totalorder %s26, 2
      %p196 = por %p194, %p195
      %p197 = scmp.ne.s32.totalorder %s186, %s187
      %p198 = scmp.eq.s32.totalorder %s26, 0
      %p199 = por %p197, %p198
      %p200 = scmp.ne.s32.totalorder %s186, %s187
      %p201 = scmp.eq.s32.totalorder %s27, 2
      %p202 = por %p200, %p201
      %p204 = scmp.ne.s32.totalorder %s187, %s203
      %p205 = scmp.eq.s32.totalorder %s27, 0
      %p206 = por %p204, %p205
      %p207 = scmp.le.s32.totalorder 1, %s21
      %p208 = scmp.lt.s32.totalorder %s21, 4
      %p209 = pnand %p207, %p208
      %p210 = pneg %p209
      // Predicated region
      $region9: #{tpu_custom_call.1} parent=5 // pred_check
        _
      $region10: #{tpu_custom_call.1} parent=5 // pred_check_branch
        %212 = sbr.rel (%p209) target = $region12
      $region11: #{tpu_custom_call.1} parent=5 // pred_region
        %s213 = ssub.s32 %s21, 1
        // Predicated region
        $region13: #{tpu_custom_call.1} parent=11 // pred_check
          %p214 = pneg %p68
        $region14: #{tpu_custom_call.1} parent=11 // pred_check_branch
          %216 = sbr.rel (%p214) target = $region16
        $region15: #{tpu_custom_call.1} parent=11 // pred_region
          %s218 = ssub.s32 8192, 8192
          %219 = vsyncadd [#allocation6], %s218
          %s220 = sshll.u32 [#allocation5], 4
          %s221 = int_to_ptr.vmem [resolvable:$true] %s220
          %226 = dma.hbm_to_vmem [thread:$0]  %s1, 8192, %s221, [#allocation6], 256, 256, 16
        $region16: #{tpu_custom_call.1} parent=11 // pred_fallthru
          _
        // Predicated region
        $region17: #{tpu_custom_call.1} parent=11 // pred_check
          %p227 = pneg %p89
        $region18: #{tpu_custom_call.1} parent=11 // pred_check_branch
          %229 = sbr.rel (%p227) target = $region20
        $region19: #{tpu_custom_call.1} parent=11 // pred_region
          %s231 = ssub.s32 64, 64
          %232 = vsyncadd [#allocation6], %s231
          %s234 = sshll.u32 [#allocation7], 4
          %s235 = int_to_ptr.vmem [resolvable:$true] %s234
          %237 = dma.hbm_to_vmem [thread:$0]  %s2, 64, %s235, [#allocation6]
        $region20: #{tpu_custom_call.1} parent=11 // pred_fallthru
          _
        // Predicated region
        $region21: #{tpu_custom_call.1} parent=11 // pred_check
          %p238 = pneg %p110
        $region22: #{tpu_custom_call.1} parent=11 // pred_check_branch
          %240 = sbr.rel (%p238) target = $region24
        $region23: #{tpu_custom_call.1} parent=11 // pred_region
          %s242 = ssub.s32 8192, 8192
          %243 = vsyncadd [#allocation9], %s242
          %s244 = sshll.u32 [#allocation8], 4
          %s245 = int_to_ptr.vmem [resolvable:$true] %s244
          %250 = dma.hbm_to_vmem [thread:$0]  %s3, 8192, %s245, [#allocation9], 128, 128, 8
        $region24: #{tpu_custom_call.1} parent=11 // pred_fallthru
          _
        // Predicated region
        $region25: #{tpu_custom_call.1} parent=11 // pred_check
          %p251 = pneg %p131
        $region26: #{tpu_custom_call.1} parent=11 // pred_check_branch
          %253 = sbr.rel (%p251) target = $region28
        $region27: #{tpu_custom_call.1} parent=11 // pred_region
          _
        $region28: #{tpu_custom_call.1} parent=11 // pred_fallthru
          _
        // Predicated region
        $region29: #{tpu_custom_call.1} parent=11 // pred_check
          %p254 = pneg %p152
        $region30: #{tpu_custom_call.1} parent=11 // pred_check_branch
          %256 = sbr.rel (%p254) target = $region32
        $region31: #{tpu_custom_call.1} parent=11 // pred_region
          %s258 = ssub.s32 2048, 2048
          %259 = vsyncadd [#allocation9], %s258
          %s260 = sshll.u32 [#allocation10], 4
          %s261 = int_to_ptr.vmem [resolvable:$true] %s260
          %266 = dma.hbm_to_vmem [thread:$0]  %s5, 2048, %s261, [#allocation9], 64, 64, 4
        $region32: #{tpu_custom_call.1} parent=11 // pred_fallthru
          _
        // Predicated region
        $region33: #{tpu_custom_call.1} parent=11 // pred_check
          %p267 = pneg %p173
        $region34: #{tpu_custom_call.1} parent=11 // pred_check_branch
          %269 = sbr.rel (%p267) target = $region36
        $region35: #{tpu_custom_call.1} parent=11 // pred_region
          _
        $region36: #{tpu_custom_call.1} parent=11 // pred_fallthru
          _
      $region12: #{tpu_custom_call.1} parent=5 // pred_fallthru
        _
      %p270 = scmp.lt.s32.totalorder %s21, 3
      // Predicated region
      $region37: #{tpu_custom_call.1} parent=5 // pred_check
        %p271 = pneg %p270
      $region38: #{tpu_custom_call.1} parent=5 // pred_check_branch
        %273 = sbr.rel (%p271) target = $region40
      $region39: #{tpu_custom_call.1} parent=5 // pred_region
        // Predicated region
        $region41: #{tpu_custom_call.1} parent=39 // pred_check
          %p274 = pneg %p41
        $region42: #{tpu_custom_call.1} parent=39 // pred_check_branch
          %276 = sbr.rel (%p274) target = $region44
        $region43: #{tpu_custom_call.1} parent=39 // pred_region
          %s277 = sand.u32 %s31, 1
          %s278 = scalar_lea.sflag [#allocation3], %s277
          %s279 = sand.u32 %s31, 1
          %s280 = smul.addr %s279, 64
          %s281 = scalar_lea.vmem [#allocation2], %s280
          %s282 = smul.u32 4, %s21
          %s283 = ssub.s32 10, %s282
          %p284 = scmp.lt.s32.totalorder %s283, 4
          %s285 = scalar_select %p284, %s283, 4
          %s286 = smul.u32 128, %s285
          %s287 = smul.u32 %s286, 2
          %s289 = ssub.s32 1024, %s287
          %290 = vsyncadd %s278, %s289
          %p291 = scmp.ne.s32.totalorder 0, %s287
          %s292 = smul.addr %s282, 2
          %s293 = smul.addr %s292, 128
          %s294 = scalar_lea.hbm %s0, %s293
          %s295 = smul.u32 16, %s285
          %s296 = sshll.u32 %s281, 4
          %s297 = int_to_ptr.vmem [resolvable:$true] %s296
          %s298 = sshll.u32 %s295, 4
          %302 = dma.hbm_to_vmem [thread:$0]  (%p291), %s294, %s298, %s297, %s278, 256, 256, 16
        $region44: #{tpu_custom_call.1} parent=39 // pred_fallthru
          _
      $region40: #{tpu_custom_call.1} parent=5 // pred_fallthru
        _
      %p303 = scmp.le.s32.totalorder 1, %s21
      %p304 = scmp.lt.s32.totalorder %s21, 4
      %p305 = pnand %p303, %p304
      %p306 = pneg %p305
      // Predicated region
      $region45: #{tpu_custom_call.1} parent=5 // pred_check
        _
      $region46: #{tpu_custom_call.1} parent=5 // pred_check_branch
        %308 = sbr.rel (%p305) target = $region48
      $region47: #{tpu_custom_call.1} parent=5 // pred_region
        %s309 = ssub.s32 %s21, 1
        %s310 = sand.u32 %s34, 1
        %s311 = scalar_lea.sflag [#allocation3], %s310
        %s312 = sand.u32 %s34, 1
        %s313 = smul.addr %s312, 64
        %s314 = scalar_lea.vmem [#allocation2], %s313
        // Predicated region
        $region49: #{tpu_custom_call.1} parent=47 // pred_check
          %p315 = pneg %p47
        $region50: #{tpu_custom_call.1} parent=47 // pred_check_branch
          %317 = sbr.rel (%p315) target = $region52
        $region51: #{tpu_custom_call.1} parent=47 // pred_region
          %318 = dma.done %s311, 1024
        $region52: #{tpu_custom_call.1} parent=47 // pred_fallthru
          _
        // Predicated region
        $region53: #{tpu_custom_call.1} parent=47 // pred_check
          %p319 = pneg %p68
        $region54: #{tpu_custom_call.1} parent=47 // pred_check_branch
          %321 = sbr.rel (%p319) target = $region56
        $region55: #{tpu_custom_call.1} parent=47 // pred_region
          %322 = dma.done [#allocation6], 8192
        $region56: #{tpu_custom_call.1} parent=47 // pred_fallthru
          _
        // Predicated region
        $region57: #{tpu_custom_call.1} parent=47 // pred_check
          %p323 = pneg %p89
        $region58: #{tpu_custom_call.1} parent=47 // pred_check_branch
          %325 = sbr.rel (%p323) target = $region60
        $region59: #{tpu_custom_call.1} parent=47 // pred_region
          %326 = dma.done [#allocation6], 64
        $region60: #{tpu_custom_call.1} parent=47 // pred_fallthru
          _
        // Predicated region
        $region61: #{tpu_custom_call.1} parent=47 // pred_check
          %p327 = pneg %p110
        $region62: #{tpu_custom_call.1} parent=47 // pred_check_branch
          %329 = sbr.rel (%p327) target = $region64
        $region63: #{tpu_custom_call.1} parent=47 // pred_region
          %330 = dma.done [#allocation9], 8192
        $region64: #{tpu_custom_call.1} parent=47 // pred_fallthru
          _
        // Predicated region
        $region65: #{tpu_custom_call.1} parent=47 // pred_check
          %p331 = pneg %p152
        $region66: #{tpu_custom_call.1} parent=47 // pred_check_branch
          %333 = sbr.rel (%p331) target = $region68
        $region67: #{tpu_custom_call.1} parent=47 // pred_region
          %334 = dma.done [#allocation9], 2048
        $region68: #{tpu_custom_call.1} parent=47 // pred_fallthru
          _
        %s335 = sand.u32 %s34, 1
        %s336 = scalar_lea.sflag [#allocation3], %s335
        %s337 = sand.u32 %s34, 1
        %s338 = smul.addr %s337, 64
        %s339 = scalar_lea.vmem [#allocation2], %s338
        %p340 = pneg %p47
        %p341 = pneg %p44
        %p342 = pneg %p68
        %p343 = pneg %p65
        %p344 = pneg %p89
        %p345 = pneg %p86
        %p346 = pneg %p110
        %p347 = pneg %p107
        %p348 = pneg %p131
        %p349 = pneg %p128
        %p350 = pneg %p152
        %p351 = pneg %p149
        %p352 = pneg %p173
        %p353 = pneg %p170
        %p354 = pneg %p199
        %p355 = pneg %p196
        %s356 = sand.u32 %s186, 1
        %s357 = scalar_lea.sflag [#allocation4], %s356
        %s358 = sand.u32 %s186, 1
        %s359 = smul.addr %s358, 32
        %s360 = scalar_lea.vmem [#allocation11], %s359
        %s361 = smul.u32 4, %s26
        %s362 = ssub.s32 10, %s361
        %p363 = scmp.lt.s32.totalorder %s362, 4
        %s364 = scalar_select %p363, %s362, 4
        %s365 = smul.u32 128, %s364
        %s366 = smul.u32 %s365, 2
        %s367 = smul.u32 4, %s26
        %s368 = ssub.s32 10, %s367
        %p369 = scmp.lt.s32.totalorder %s368, 4
        %s370 = scalar_select %p369, %s368, 4
        %s371 = smul.u32 128, %s370
        %v373 = vld [vmem:[%s314] sm:$0xff]
        %v374 = vld [vmem:[%s314 + $0x8] sm:$0xff]
        %v375 = vld [vmem:[%s314 + $0x10] sm:$0xff]
        %v376 = vld [vmem:[%s314 + $0x18] sm:$0xff]
        %v377 = vld [vmem:[%s314 + $0x20] sm:$0xff]
        %v378 = vld [vmem:[%s314 + $0x28] sm:$0xff]
        %v379 = vld [vmem:[%s314 + $0x30] sm:$0xff]
        %v380 = vld [vmem:[%s314 + $0x38] sm:$0xff]
        %v381 = vpack.c.bf16 %v375, %v373
        %v382 = vpack.c.bf16 %v376, %v374
        %v383 = vpack.c.bf16 %v379, %v377
        %v384 = vpack.c.bf16 %v380, %v378
        %v385 = vld [vmem:[#allocation5] sm:$0xff]
        %v386 = vld [vmem:[#allocation5 + $0x8] sm:$0xff]
        %v387 = vld [vmem:[#allocation5 + $0x10] sm:$0xff]
        %v388 = vld [vmem:[#allocation5 + $0x18] sm:$0xff]
        %v389 = vld [vmem:[#allocation5 + $0x20] sm:$0xff]
        %v390 = vld [vmem:[#allocation5 + $0x28] sm:$0xff]
        %v391 = vld [vmem:[#allocation5 + $0x30] sm:$0xff]
        %v392 = vld [vmem:[#allocation5 + $0x38] sm:$0xff]
        %v393 = vld [vmem:[#allocation5 + $0x40] sm:$0xff]
        %v394 = vld [vmem:[#allocation5 + $0x48] sm:$0xff]
        %v395 = vld [vmem:[#allocation5 + $0x50] sm:$0xff]
        %v396 = vld [vmem:[#allocation5 + $0x58] sm:$0xff]
        %v397 = vld [vmem:[#allocation5 + $0x60] sm:$0xff]
        %v398 = vld [vmem:[#allocation5 + $0x68] sm:$0xff]
        %v399 = vld [vmem:[#allocation5 + $0x70] sm:$0xff]
        %v400 = vld [vmem:[#allocation5 + $0x78] sm:$0xff]
        %v401 = vld [vmem:[#allocation5 + $0x80] sm:$0xff]
        %v402 = vld [vmem:[#allocation5 + $0x88] sm:$0xff]
        %v403 = vld [vmem:[#allocation5 + $0x90] sm:$0xff]
        %v404 = vld [vmem:[#allocation5 + $0x98] sm:$0xff]
        %v405 = vld [vmem:[#allocation5 + $0xa0] sm:$0xff]
        %v406 = vld [vmem:[#allocation5 + $0xa8] sm:$0xff]
        %v407 = vld [vmem:[#allocation5 + $0xb0] sm:$0xff]
        %v408 = vld [vmem:[#allocation5 + $0xb8] sm:$0xff]
        %v409 = vld [vmem:[#allocation5 + $0xc0] sm:$0xff]
        %v410 = vld [vmem:[#allocation5 + $0xc8] sm:$0xff]
        %v411 = vld [vmem:[#allocation5 + $0xd0] sm:$0xff]
        %v412 = vld [vmem:[#allocation5 + $0xd8] sm:$0xff]
        %v413 = vld [vmem:[#allocation5 + $0xe0] sm:$0xff]
        %v414 = vld [vmem:[#allocation5 + $0xe8] sm:$0xff]
        %v415 = vld [vmem:[#allocation5 + $0xf0] sm:$0xff]
        %v416 = vld [vmem:[#allocation5 + $0xf8] sm:$0xff]
        %v417 = vld [vmem:[#allocation5 + $0x100] sm:$0xff]
        %v418 = vld [vmem:[#allocation5 + $0x108] sm:$0xff]
        %v419 = vld [vmem:[#allocation5 + $0x110] sm:$0xff]
        %v420 = vld [vmem:[#allocation5 + $0x118] sm:$0xff]
        %v421 = vld [vmem:[#allocation5 + $0x120] sm:$0xff]
        %v422 = vld [vmem:[#allocation5 + $0x128] sm:$0xff]
        %v423 = vld [vmem:[#allocation5 + $0x130] sm:$0xff]
        %v424 = vld [vmem:[#allocation5 + $0x138] sm:$0xff]
        %v425 = vld [vmem:[#allocation5 + $0x140] sm:$0xff]
        %v426 = vld [vmem:[#allocation5 + $0x148] sm:$0xff]
        %v427 = vld [vmem:[#allocation5 + $0x150] sm:$0xff]
        %v428 = vld [vmem:[#allocation5 + $0x158] sm:$0xff]
        %v429 = vld [vmem:[#allocation5 + $0x160] sm:$0xff]
        %v430 = vld [vmem:[#allocation5 + $0x168] sm:$0xff]
        %v431 = vld [vmem:[#allocation5 + $0x170] sm:$0xff]
        %v432 = vld [vmem:[#allocation5 + $0x178] sm:$0xff]
        %v433 = vld [vmem:[#allocation5 + $0x180] sm:$0xff]
        %v434 = vld [vmem:[#allocation5 + $0x188] sm:$0xff]
        %v435 = vld [vmem:[#allocation5 + $0x190] sm:$0xff]
        %v436 = vld [vmem:[#allocation5 + $0x198] sm:$0xff]
        %v437 = vld [vmem:[#allocation5 + $0x1a0] sm:$0xff]
        %v438 = vld [vmem:[#allocation5 + $0x1a8] sm:$0xff]
        %v439 = vld [vmem:[#allocation5 + $0x1b0] sm:$0xff]
        %v440 = vld [vmem:[#allocation5 + $0x1b8] sm:$0xff]
        %v441 = vld [vmem:[#allocation5 + $0x1c0] sm:$0xff]
        %v442 = vld [vmem:[#allocation5 + $0x1c8] sm:$0xff]
        %v443 = vld [vmem:[#allocation5 + $0x1d0] sm:$0xff]
        %v444 = vld [vmem:[#allocation5 + $0x1d8] sm:$0xff]
        %v445 = vld [vmem:[#allocation5 + $0x1e0] sm:$0xff]
        %v446 = vld [vmem:[#allocation5 + $0x1e8] sm:$0xff]
        %v447 = vld [vmem:[#allocation5 + $0x1f0] sm:$0xff]
        %v448 = vld [vmem:[#allocation5 + $0x1f8] sm:$0xff]
        %v449 = vld [vmem:[#allocation7] sm:$0xf]
        %v451 = vlaneseq
        %v452 = vshrl.u32 %v451, 7
        %v453 = vsub.s32 0, %v452
        %v454 = vrot.slane %v449, %v453
        %v455 = vlaneseq
        %v456 = vshrl.u32 %v455, 7
        %v457 = vsub.s32 1, %v456
        %v458 = vrot.slane %v449, %v457
        %v459 = vlaneseq
        %v460 = vshrl.u32 %v459, 7
        %v461 = vsub.s32 2, %v460
        %v462 = vrot.slane %v449, %v461
        %v463 = vlaneseq
        %v464 = vshrl.u32 %v463, 7
        %v465 = vsub.s32 3, %v464
        %v466 = vrot.slane %v449, %v465
        %v535 = vunpack.c.l.b16 %v385
        %v536 = vunpack.c.h.b16 %v385
        %v537 = vunpack.c.l.b16 %v386
        %v538 = vunpack.c.h.b16 %v386
        %v539 = vunpack.c.l.b16 %v387
        %v540 = vunpack.c.h.b16 %v387
        %v541 = vunpack.c.l.b16 %v388
        %v542 = vunpack.c.h.b16 %v388
        %v543 = vunpack.c.l.b16 %v389
        %v544 = vunpack.c.h.b16 %v389
        %v545 = vunpack.c.l.b16 %v390
        %v546 = vunpack.c.h.b16 %v390
        %v547 = vunpack.c.l.b16 %v391
        %v548 = vunpack.c.h.b16 %v391
        %v549 = vunpack.c.l.b16 %v392
        %v550 = vunpack.c.h.b16 %v392
        %v551 = vunpack.c.l.b16 %v393
        %v552 = vunpack.c.h.b16 %v393
        %v553 = vunpack.c.l.b16 %v394
        %v554 = vunpack.c.h.b16 %v394
        %v555 = vunpack.c.l.b16 %v395
        %v556 = vunpack.c.h.b16 %v395
        %v557 = vunpack.c.l.b16 %v396
        %v558 = vunpack.c.h.b16 %v396
        %v559 = vunpack.c.l.b16 %v397
        %v560 = vunpack.c.h.b16 %v397
        %v561 = vunpack.c.l.b16 %v398
        %v562 = vunpack.c.h.b16 %v398
        %v563 = vunpack.c.l.b16 %v399
        %v564 = vunpack.c.h.b16 %v399
        %v565 = vunpack.c.l.b16 %v400
        %v566 = vunpack.c.h.b16 %v400
        %v567 = vunpack.c.l.b16 %v401
        %v568 = vunpack.c.h.b16 %v401
        %v569 = vunpack.c.l.b16 %v402
        %v570 = vunpack.c.h.b16 %v402
        %v571 = vunpack.c.l.b16 %v403
        %v572 = vunpack.c.h.b16 %v403
        %v573 = vunpack.c.l.b16 %v404
        %v574 = vunpack.c.h.b16 %v404
        %v575 = vunpack.c.l.b16 %v405
        %v576 = vunpack.c.h.b16 %v405
        %v577 = vunpack.c.l.b16 %v406
        %v578 = vunpack.c.h.b16 %v406
        %v579 = vunpack.c.l.b16 %v407
        %v580 = vunpack.c.h.b16 %v407
        %v581 = vunpack.c.l.b16 %v408
        %v582 = vunpack.c.h.b16 %v408
        %v583 = vunpack.c.l.b16 %v409
        %v584 = vunpack.c.h.b16 %v409
        %v585 = vunpack.c.l.b16 %v410
        %v586 = vunpack.c.h.b16 %v410
        %v587 = vunpack.c.l.b16 %v411
        %v588 = vunpack.c.h.b16 %v411
        %v589 = vunpack.c.l.b16 %v412
        %v590 = vunpack.c.h.b16 %v412
        %v591 = vunpack.c.l.b16 %v413
        %v592 = vunpack.c.h.b16 %v413
        %v593 = vunpack.c.l.b16 %v414
        %v594 = vunpack.c.h.b16 %v414
        %v595 = vunpack.c.l.b16 %v415
        %v596 = vunpack.c.h.b16 %v415
        %v597 = vunpack.c.l.b16 %v416
        %v598 = vunpack.c.h.b16 %v416
        %v599 = vunpack.c.l.b16 %v417
        %v600 = vunpack.c.h.b16 %v417
        %v601 = vunpack.c.l.b16 %v418
        %v602 = vunpack.c.h.b16 %v418
        %v603 = vunpack.c.l.b16 %v419
        %v604 = vunpack.c.h.b16 %v419
        %v605 = vunpack.c.l.b16 %v420
        %v606 = vunpack.c.h.b16 %v420
        %v607 = vunpack.c.l.b16 %v421
        %v608 = vunpack.c.h.b16 %v421
        %v609 = vunpack.c.l.b16 %v422
        %v610 = vunpack.c.h.b16 %v422
        %v611 = vunpack.c.l.b16 %v423
        %v612 = vunpack.c.h.b16 %v423
        %v613 = vunpack.c.l.b16 %v424
        %v614 = vunpack.c.h.b16 %v424
        %v615 = vunpack.c.l.b16 %v425
        %v616 = vunpack.c.h.b16 %v425
        %v617 = vunpack.c.l.b16 %v426
        %v618 = vunpack.c.h.b16 %v426
        %v619 = vunpack.c.l.b16 %v427
        %v620 = vunpack.c.h.b16 %v427
        %v621 = vunpack.c.l.b16 %v428
        %v622 = vunpack.c.h.b16 %v428
        %v623 = vunpack.c.l.b16 %v429
        %v624 = vunpack.c.h.b16 %v429
        %v625 = vunpack.c.l.b16 %v430
        %v626 = vunpack.c.h.b16 %v430
        %v627 = vunpack.c.l.b16 %v431
        %v628 = vunpack.c.h.b16 %v431
        %v629 = vunpack.c.l.b16 %v432
        %v630 = vunpack.c.h.b16 %v432
        %v631 = vunpack.c.l.b16 %v433
        %v632 = vunpack.c.h.b16 %v433
        %v633 = vunpack.c.l.b16 %v434
        %v634 = vunpack.c.h.b16 %v434
        %v635 = vunpack.c.l.b16 %v435
        %v636 = vunpack.c.h.b16 %v435
        %v637 = vunpack.c.l.b16 %v436
        %v638 = vunpack.c.h.b16 %v436
        %v639 = vunpack.c.l.b16 %v437
        %v640 = vunpack.c.h.b16 %v437
        %v641 = vunpack.c.l.b16 %v438
        %v642 = vunpack.c.h.b16 %v438
        %v643 = vunpack.c.l.b16 %v439
        %v644 = vunpack.c.h.b16 %v439
        %v645 = vunpack.c.l.b16 %v440
        %v646 = vunpack.c.h.b16 %v440
        %v647 = vunpack.c.l.b16 %v441
        %v648 = vunpack.c.h.b16 %v441
        %v649 = vunpack.c.l.b16 %v442
        %v650 = vunpack.c.h.b16 %v442
        %v651 = vunpack.c.l.b16 %v443
        %v652 = vunpack.c.h.b16 %v443
        %v653 = vunpack.c.l.b16 %v444
        %v654 = vunpack.c.h.b16 %v444
        %v655 = vunpack.c.l.b16 %v445
        %v656 = vunpack.c.h.b16 %v445
        %v657 = vunpack.c.l.b16 %v446
        %v658 = vunpack.c.h.b16 %v446
        %v659 = vunpack.c.l.b16 %v447
        %v660 = vunpack.c.h.b16 %v447
        %v661 = vunpack.c.l.b16 %v448
        %v662 = vunpack.c.h.b16 %v448
        %v663 = vpack.c.b16 %v539, %v535
        %v664 = vpack.c.b16 %v540, %v536
        %v665 = vpack.c.b16 %v541, %v537
        %v666 = vpack.c.b16 %v542, %v538
        %v667 = vpack.c.b16 %v547, %v543
        %v668 = vpack.c.b16 %v548, %v544
        %v669 = vpack.c.b16 %v549, %v545
        %v670 = vpack.c.b16 %v550, %v546
        %v671 = vpack.c.b16 %v555, %v551
        %v672 = vpack.c.b16 %v556, %v552
        %v673 = vpack.c.b16 %v557, %v553
        %v674 = vpack.c.b16 %v558, %v554
        %v675 = vpack.c.b16 %v563, %v559
        %v676 = vpack.c.b16 %v564, %v560
        %v677 = vpack.c.b16 %v565, %v561
        %v678 = vpack.c.b16 %v566, %v562
        %v679 = vpack.c.b16 %v571, %v567
        %v680 = vpack.c.b16 %v572, %v568
        %v681 = vpack.c.b16 %v573, %v569
        %v682 = vpack.c.b16 %v574, %v570
        %v683 = vpack.c.b16 %v579, %v575
        %v684 = vpack.c.b16 %v580, %v576
        %v685 = vpack.c.b16 %v581, %v577
        %v686 = vpack.c.b16 %v582, %v578
        %v687 = vpack.c.b16 %v587, %v583
        %v688 = vpack.c.b16 %v588, %v584
        %v689 = vpack.c.b16 %v589, %v585
        %v690 = vpack.c.b16 %v590, %v586
        %v691 = vpack.c.b16 %v595, %v591
        %v692 = vpack.c.b16 %v596, %v592
        %v693 = vpack.c.b16 %v597, %v593
        %v694 = vpack.c.b16 %v598, %v594
        %v695 = vpack.c.b16 %v603, %v599
        %v696 = vpack.c.b16 %v604, %v600
        %v697 = vpack.c.b16 %v605, %v601
        %v698 = vpack.c.b16 %v606, %v602
        %v699 = vpack.c.b16 %v611, %v607
        %v700 = vpack.c.b16 %v612, %v608
        %v701 = vpack.c.b16 %v613, %v609
        %v702 = vpack.c.b16 %v614, %v610
        %v703 = vpack.c.b16 %v619, %v615
        %v704 = vpack.c.b16 %v620, %v616
        %v705 = vpack.c.b16 %v621, %v617
        %v706 = vpack.c.b16 %v622, %v618
        %v707 = vpack.c.b16 %v627, %v623
        %v708 = vpack.c.b16 %v628, %v624
        %v709 = vpack.c.b16 %v629, %v625
        %v710 = vpack.c.b16 %v630, %v626
        %v711 = vpack.c.b16 %v635, %v631
        %v712 = vpack.c.b16 %v636, %v632
        %v713 = vpack.c.b16 %v637, %v633
        %v714 = vpack.c.b16 %v638, %v634
        %v715 = vpack.c.b16 %v643, %v639
        %v716 = vpack.c.b16 %v644, %v640
        %v717 = vpack.c.b16 %v645, %v641
        %v718 = vpack.c.b16 %v646, %v642
        %v719 = vpack.c.b16 %v651, %v647
        %v720 = vpack.c.b16 %v652, %v648
        %v721 = vpack.c.b16 %v653, %v649
        %v722 = vpack.c.b16 %v654, %v650
        %v723 = vpack.c.b16 %v659, %v655
        %v724 = vpack.c.b16 %v660, %v656
        %v725 = vpack.c.b16 %v661, %v657
        %v726 = vpack.c.b16 %v662, %v658
        %791 = vmatprep.subr.bf16.mxu0 %v692
        %792 = vmatpush1.bf16.msra.mxu0 %v691
        %793 = vmatprep.subr.bf16.mxu0 %v688
        %794 = vmatpush1.bf16.msra.mxu0 %v687
        %795 = vmatprep.subr.bf16.mxu0 %v684
        %796 = vmatpush1.bf16.msra.mxu0 %v683
        %797 = vmatprep.subr.bf16.mxu0 %v680
        %798 = vmatpush1.bf16.msra.mxu0 %v679
        %799 = vmatprep.subr.bf16.mxu0 %v676
        %800 = vmatpush1.bf16.msra.mxu0 %v675
        %801 = vmatprep.subr.bf16.mxu0 %v672
        %802 = vmatpush1.bf16.msra.mxu0 %v671
        %803 = vmatprep.subr.bf16.mxu0 %v668
        %804 = vmatpush1.bf16.msra.mxu0 %v667
        %805 = vmatprep.subr.bf16.mxu0 %v664
        %806 = vmatpush1.bf16.msra.mxu0 %v663
        %807 = vmatprep.subr.bf16.mxu0 %v724
        %808 = vmatpush2.bf16.msra.mxu0 %v723
        %809 = vmatprep.subr.bf16.mxu0 %v720
        %810 = vmatpush2.bf16.msra.mxu0 %v719
        %811 = vmatprep.subr.bf16.mxu0 %v716
        %812 = vmatpush2.bf16.msra.mxu0 %v715
        %813 = vmatprep.subr.bf16.mxu0 %v712
        %814 = vmatpush2.bf16.msra.mxu0 %v711
        %815 = vmatprep.subr.bf16.mxu0 %v708
        %816 = vmatpush2.bf16.msra.mxu0 %v707
        %817 = vmatprep.subr.bf16.mxu0 %v704
        %818 = vmatpush2.bf16.msra.mxu0 %v703
        %819 = vmatprep.subr.bf16.mxu0 %v700
        %820 = vmatpush2.bf16.msra.mxu0 %v699
        %821 = vmatprep.subr.bf16.mxu0 %v696
        %822 = vmatpush2.bf16.msra.mxu0 %v695
        %823 = vmatprep.mubr.bf16.mxu0 %v382
        %824 = vmatmul.mubr.bf16.gmra.mxu0 %v381
        %v825 = vpop.f32.mrf.mxu0
        %v826 = vadd.f32 %v454, %v825
        %v827 = vpop.f32.mrf.mxu0
        %v828 = vadd.f32 %v458, %v827
        %v829 = vpop.f32.mrf.mxu0
        %v830 = vadd.f32 %v454, %v829
        %v831 = vpop.f32.mrf.mxu0
        %v832 = vadd.f32 %v458, %v831
        %833 = vmatprep.mubr.bf16.mxu0 %v384
        %834 = vmatmul.mubr.bf16.gmra.mxu0 %v383
        %v835 = vpop.f32.mrf.mxu0
        %v836 = vadd.f32 %v454, %v835
        %v837 = vpop.f32.mrf.mxu0
        %v838 = vadd.f32 %v458, %v837
        %v839 = vpop.f32.mrf.mxu0
        %v840 = vadd.f32 %v454, %v839
        %v841 = vpop.f32.mrf.mxu0
        %v842 = vadd.f32 %v458, %v841
        %843 = vdwg.mxu0
        %844 = vmatprep.subr.bf16.mxu0 %v694
        %845 = vmatpush1.bf16.msra.mxu0 %v693
        %846 = vmatprep.subr.bf16.mxu0 %v690
        %847 = vmatpush1.bf16.msra.mxu0 %v689
        %848 = vmatprep.subr.bf16.mxu0 %v686
        %849 = vmatpush1.bf16.msra.mxu0 %v685
        %850 = vmatprep.subr.bf16.mxu0 %v682
        %851 = vmatpush1.bf16.msra.mxu0 %v681
        %852 = vmatprep.subr.bf16.mxu0 %v678
        %853 = vmatpush1.bf16.msra.mxu0 %v677
        %854 = vmatprep.subr.bf16.mxu0 %v674
        %855 = vmatpush1.bf16.msra.mxu0 %v673
        %856 = vmatprep.subr.bf16.mxu0 %v670
        %857 = vmatpush1.bf16.msra.mxu0 %v669
        %858 = vmatprep.subr.bf16.mxu0 %v666
        %859 = vmatpush1.bf16.msra.mxu0 %v665
        %860 = vmatprep.subr.bf16.mxu0 %v726
        %861 = vmatpush2.bf16.msra.mxu0 %v725
        %862 = vmatprep.subr.bf16.mxu0 %v722
        %863 = vmatpush2.bf16.msra.mxu0 %v721
        %864 = vmatprep.subr.bf16.mxu0 %v718
        %865 = vmatpush2.bf16.msra.mxu0 %v717
        %866 = vmatprep.subr.bf16.mxu0 %v714
        %867 = vmatpush2.bf16.msra.mxu0 %v713
        %868 = vmatprep.subr.bf16.mxu0 %v710
        %869 = vmatpush2.bf16.msra.mxu0 %v709
        %870 = vmatprep.subr.bf16.mxu0 %v706
        %871 = vmatpush2.bf16.msra.mxu0 %v705
        %872 = vmatprep.subr.bf16.mxu0 %v702
        %873 = vmatpush2.bf16.msra.mxu0 %v701
        %874 = vmatprep.subr.bf16.mxu0 %v698
        %875 = vmatpush2.bf16.msra.mxu0 %v697
        %876 = vmatprep.mubr.bf16.mxu0 %v382
        %877 = vmatmul.mubr.bf16.gmra.mxu0 %v381
        %v878 = vpop.f32.mrf.mxu0
        %v879 = vadd.f32 %v462, %v878
        %v880 = vpop.f32.mrf.mxu0
        %v881 = vadd.f32 %v466, %v880
        %v882 = vpop.f32.mrf.mxu0
        %v883 = vadd.f32 %v462, %v882
        %v884 = vpop.f32.mrf.mxu0
        %v885 = vadd.f32 %v466, %v884
        %886 = vmatprep.mubr.bf16.mxu0 %v384
        %887 = vmatmul.mubr.bf16.gmra.mxu0 %v383
        %v888 = vpop.f32.mrf.mxu0
        %v889 = vadd.f32 %v462, %v888
        %v890 = vpop.f32.mrf.mxu0
        %v891 = vadd.f32 %v466, %v890
        %v892 = vpop.f32.mrf.mxu0
        %v893 = vadd.f32 %v462, %v892
        %v894 = vpop.f32.mrf.mxu0
        %v895 = vadd.f32 %v466, %v894
        %896 = vdwg.mxu0
        %v897 = vmax.f32 %v826, 0.0
        %v898 = vmax.f32 %v828, 0.0
        %v899 = vmax.f32 %v879, 0.0
        %v900 = vmax.f32 %v881, 0.0
        %v901 = vmax.f32 %v830, 0.0
        %v902 = vmax.f32 %v832, 0.0
        %v903 = vmax.f32 %v883, 0.0
        %v904 = vmax.f32 %v885, 0.0
        %v905 = vmax.f32 %v836, 0.0
        %v906 = vmax.f32 %v838, 0.0
        %v907 = vmax.f32 %v889, 0.0
        %v908 = vmax.f32 %v891, 0.0
        %v909 = vmax.f32 %v840, 0.0
        %v910 = vmax.f32 %v842, 0.0
        %v911 = vmax.f32 %v893, 0.0
        %v912 = vmax.f32 %v895, 0.0
        %v913 = vpack.c.bf16 %v901, %v897
        %v914 = vpack.c.bf16 %v902, %v898
        %v915 = vpack.c.bf16 %v903, %v899
        %v916 = vpack.c.bf16 %v904, %v900
        %v917 = vpack.c.bf16 %v909, %v905
        %v918 = vpack.c.bf16 %v910, %v906
        %v919 = vpack.c.bf16 %v911, %v907
        %v920 = vpack.c.bf16 %v912, %v908
        %v921 = vld [vmem:[#allocation8] sm:$0xff]
        %v922 = vld [vmem:[#allocation8 + $0x8] sm:$0xff]
        %v923 = vld [vmem:[#allocation8 + $0x10] sm:$0xff]
        %v924 = vld [vmem:[#allocation8 + $0x18] sm:$0xff]
        %v925 = vld [vmem:[#allocation8 + $0x20] sm:$0xff]
        %v926 = vld [vmem:[#allocation8 + $0x28] sm:$0xff]
        %v927 = vld [vmem:[#allocation8 + $0x30] sm:$0xff]
        %v928 = vld [vmem:[#allocation8 + $0x38] sm:$0xff]
        %v929 = vld [vmem:[#allocation8 + $0x40] sm:$0xff]
        %v930 = vld [vmem:[#allocation8 + $0x48] sm:$0xff]
        %v931 = vld [vmem:[#allocation8 + $0x50] sm:$0xff]
        %v932 = vld [vmem:[#allocation8 + $0x58] sm:$0xff]
        %v933 = vld [vmem:[#allocation8 + $0x60] sm:$0xff]
        %v934 = vld [vmem:[#allocation8 + $0x68] sm:$0xff]
        %v935 = vld [vmem:[#allocation8 + $0x70] sm:$0xff]
        %v936 = vld [vmem:[#allocation8 + $0x78] sm:$0xff]
        %v937 = vld [vmem:[#allocation8 + $0x80] sm:$0xff]
        %v938 = vld [vmem:[#allocation8 + $0x88] sm:$0xff]
        %v939 = vld [vmem:[#allocation8 + $0x90] sm:$0xff]
        %v940 = vld [vmem:[#allocation8 + $0x98] sm:$0xff]
        %v941 = vld [vmem:[#allocation8 + $0xa0] sm:$0xff]
        %v942 = vld [vmem:[#allocation8 + $0xa8] sm:$0xff]
        %v943 = vld [vmem:[#allocation8 + $0xb0] sm:$0xff]
        %v944 = vld [vmem:[#allocation8 + $0xb8] sm:$0xff]
        %v945 = vld [vmem:[#allocation8 + $0xc0] sm:$0xff]
        %v946 = vld [vmem:[#allocation8 + $0xc8] sm:$0xff]
        %v947 = vld [vmem:[#allocation8 + $0xd0] sm:$0xff]
        %v948 = vld [vmem:[#allocation8 + $0xd8] sm:$0xff]
        %v949 = vld [vmem:[#allocation8 + $0xe0] sm:$0xff]
        %v950 = vld [vmem:[#allocation8 + $0xe8] sm:$0xff]
        %v951 = vld [vmem:[#allocation8 + $0xf0] sm:$0xff]
        %v952 = vld [vmem:[#allocation8 + $0xf8] sm:$0xff]
        %v953 = vld [vmem:[#allocation8 + $0x100] sm:$0xff]
        %v954 = vld [vmem:[#allocation8 + $0x108] sm:$0xff]
        %v955 = vld [vmem:[#allocation8 + $0x110] sm:$0xff]
        %v956 = vld [vmem:[#allocation8 + $0x118] sm:$0xff]
        %v957 = vld [vmem:[#allocation8 + $0x120] sm:$0xff]
        %v958 = vld [vmem:[#allocation8 + $0x128] sm:$0xff]
        %v959 = vld [vmem:[#allocation8 + $0x130] sm:$0xff]
        %v960 = vld [vmem:[#allocation8 + $0x138] sm:$0xff]
        %v961 = vld [vmem:[#allocation8 + $0x140] sm:$0xff]
        %v962 = vld [vmem:[#allocation8 + $0x148] sm:$0xff]
        %v963 = vld [vmem:[#allocation8 + $0x150] sm:$0xff]
        %v964 = vld [vmem:[#allocation8 + $0x158] sm:$0xff]
        %v965 = vld [vmem:[#allocation8 + $0x160] sm:$0xff]
        %v966 = vld [vmem:[#allocation8 + $0x168] sm:$0xff]
        %v967 = vld [vmem:[#allocation8 + $0x170] sm:$0xff]
        %v968 = vld [vmem:[#allocation8 + $0x178] sm:$0xff]
        %v969 = vld [vmem:[#allocation8 + $0x180] sm:$0xff]
        %v970 = vld [vmem:[#allocation8 + $0x188] sm:$0xff]
        %v971 = vld [vmem:[#allocation8 + $0x190] sm:$0xff]
        %v972 = vld [vmem:[#allocation8 + $0x198] sm:$0xff]
        %v973 = vld [vmem:[#allocation8 + $0x1a0] sm:$0xff]
        %v974 = vld [vmem:[#allocation8 + $0x1a8] sm:$0xff]
        %v975 = vld [vmem:[#allocation8 + $0x1b0] sm:$0xff]
        %v976 = vld [vmem:[#allocation8 + $0x1b8] sm:$0xff]
        %v977 = vld [vmem:[#allocation8 + $0x1c0] sm:$0xff]
        %v978 = vld [vmem:[#allocation8 + $0x1c8] sm:$0xff]
        %v979 = vld [vmem:[#allocation8 + $0x1d0] sm:$0xff]
        %v980 = vld [vmem:[#allocation8 + $0x1d8] sm:$0xff]
        %v981 = vld [vmem:[#allocation8 + $0x1e0] sm:$0xff]
        %v982 = vld [vmem:[#allocation8 + $0x1e8] sm:$0xff]
        %v983 = vld [vmem:[#allocation8 + $0x1f0] sm:$0xff]
        %v984 = vld [vmem:[#allocation8 + $0x1f8] sm:$0xff]
        %v985 = vld [vmem:[%s4] sm:$0x3]
        %v987 = vlaneseq
        %v988 = vshrl.u32 %v987, 7
        %v989 = vsub.s32 0, %v988
        %v990 = vrot.slane %v985, %v989
        %v991 = vlaneseq
        %v992 = vshrl.u32 %v991, 7
        %v993 = vsub.s32 1, %v992
        %v994 = vrot.slane %v985, %v993
        %v1061 = vunpack.c.l.b16 %v921
        %v1062 = vunpack.c.h.b16 %v921
        %v1063 = vunpack.c.l.b16 %v922
        %v1064 = vunpack.c.h.b16 %v922
        %v1065 = vunpack.c.l.b16 %v923
        %v1066 = vunpack.c.h.b16 %v923
        %v1067 = vunpack.c.l.b16 %v924
        %v1068 = vunpack.c.h.b16 %v924
        %v1069 = vunpack.c.l.b16 %v925
        %v1070 = vunpack.c.h.b16 %v925
        %v1071 = vunpack.c.l.b16 %v926
        %v1072 = vunpack.c.h.b16 %v926
        %v1073 = vunpack.c.l.b16 %v927
        %v1074 = vunpack.c.h.b16 %v927
        %v1075 = vunpack.c.l.b16 %v928
        %v1076 = vunpack.c.h.b16 %v928
        %v1077 = vunpack.c.l.b16 %v929
        %v1078 = vunpack.c.h.b16 %v929
        %v1079 = vunpack.c.l.b16 %v930
        %v1080 = vunpack.c.h.b16 %v930
        %v1081 = vunpack.c.l.b16 %v931
        %v1082 = vunpack.c.h.b16 %v931
        %v1083 = vunpack.c.l.b16 %v932
        %v1084 = vunpack.c.h.b16 %v932
        %v1085 = vunpack.c.l.b16 %v933
        %v1086 = vunpack.c.h.b16 %v933
        %v1087 = vunpack.c.l.b16 %v934
        %v1088 = vunpack.c.h.b16 %v934
        %v1089 = vunpack.c.l.b16 %v935
        %v1090 = vunpack.c.h.b16 %v935
        %v1091 = vunpack.c.l.b16 %v936
        %v1092 = vunpack.c.h.b16 %v936
        %v1093 = vunpack.c.l.b16 %v937
        %v1094 = vunpack.c.h.b16 %v937
        %v1095 = vunpack.c.l.b16 %v938
        %v1096 = vunpack.c.h.b16 %v938
        %v1097 = vunpack.c.l.b16 %v939
        %v1098 = vunpack.c.h.b16 %v939
        %v1099 = vunpack.c.l.b16 %v940
        %v1100 = vunpack.c.h.b16 %v940
        %v1101 = vunpack.c.l.b16 %v941
        %v1102 = vunpack.c.h.b16 %v941
        %v1103 = vunpack.c.l.b16 %v942
        %v1104 = vunpack.c.h.b16 %v942
        %v1105 = vunpack.c.l.b16 %v943
        %v1106 = vunpack.c.h.b16 %v943
        %v1107 = vunpack.c.l.b16 %v944
        %v1108 = vunpack.c.h.b16 %v944
        %v1109 = vunpack.c.l.b16 %v945
        %v1110 = vunpack.c.h.b16 %v945
        %v1111 = vunpack.c.l.b16 %v946
        %v1112 = vunpack.c.h.b16 %v946
        %v1113 = vunpack.c.l.b16 %v947
        %v1114 = vunpack.c.h.b16 %v947
        %v1115 = vunpack.c.l.b16 %v948
        %v1116 = vunpack.c.h.b16 %v948
        %v1117 = vunpack.c.l.b16 %v949
        %v1118 = vunpack.c.h.b16 %v949
        %v1119 = vunpack.c.l.b16 %v950
        %v1120 = vunpack.c.h.b16 %v950
        %v1121 = vunpack.c.l.b16 %v951
        %v1122 = vunpack.c.h.b16 %v951
        %v1123 = vunpack.c.l.b16 %v952
        %v1124 = vunpack.c.h.b16 %v952
        %v1125 = vunpack.c.l.b16 %v953
        %v1126 = vunpack.c.h.b16 %v953
        %v1127 = vunpack.c.l.b16 %v954
        %v1128 = vunpack.c.h.b16 %v954
        %v1129 = vunpack.c.l.b16 %v955
        %v1130 = vunpack.c.h.b16 %v955
        %v1131 = vunpack.c.l.b16 %v956
        %v1132 = vunpack.c.h.b16 %v956
        %v1133 = vunpack.c.l.b16 %v957
        %v1134 = vunpack.c.h.b16 %v957
        %v1135 = vunpack.c.l.b16 %v958
        %v1136 = vunpack.c.h.b16 %v958
        %v1137 = vunpack.c.l.b16 %v959
        %v1138 = vunpack.c.h.b16 %v959
        %v1139 = vunpack.c.l.b16 %v960
        %v1140 = vunpack.c.h.b16 %v960
        %v1141 = vunpack.c.l.b16 %v961
        %v1142 = vunpack.c.h.b16 %v961
        %v1143 = vunpack.c.l.b16 %v962
        %v1144 = vunpack.c.h.b16 %v962
        %v1145 = vunpack.c.l.b16 %v963
        %v1146 = vunpack.c.h.b16 %v963
        %v1147 = vunpack.c.l.b16 %v964
        %v1148 = vunpack.c.h.b16 %v964
        %v1149 = vunpack.c.l.b16 %v965
        %v1150 = vunpack.c.h.b16 %v965
        %v1151 = vunpack.c.l.b16 %v966
        %v1152 = vunpack.c.h.b16 %v966
        %v1153 = vunpack.c.l.b16 %v967
        %v1154 = vunpack.c.h.b16 %v967
        %v1155 = vunpack.c.l.b16 %v968
        %v1156 = vunpack.c.h.b16 %v968
        %v1157 = vunpack.c.l.b16 %v969
        %v1158 = vunpack.c.h.b16 %v969
        %v1159 = vunpack.c.l.b16 %v970
        %v1160 = vunpack.c.h.b16 %v970
        %v1161 = vunpack.c.l.b16 %v971
        %v1162 = vunpack.c.h.b16 %v971
        %v1163 = vunpack.c.l.b16 %v972
        %v1164 = vunpack.c.h.b16 %v972
        %v1165 = vunpack.c.l.b16 %v973
        %v1166 = vunpack.c.h.b16 %v973
        %v1167 = vunpack.c.l.b16 %v974
        %v1168 = vunpack.c.h.b16 %v974
        %v1169 = vunpack.c.l.b16 %v975
        %v1170 = vunpack.c.h.b16 %v975
        %v1171 = vunpack.c.l.b16 %v976
        %v1172 = vunpack.c.h.b16 %v976
        %v1173 = vunpack.c.l.b16 %v977
        %v1174 = vunpack.c.h.b16 %v977
        %v1175 = vunpack.c.l.b16 %v978
        %v1176 = vunpack.c.h.b16 %v978
        %v1177 = vunpack.c.l.b16 %v979
        %v1178 = vunpack.c.h.b16 %v979
        %v1179 = vunpack.c.l.b16 %v980
        %v1180 = vunpack.c.h.b16 %v980
        %v1181 = vunpack.c.l.b16 %v981
        %v1182 = vunpack.c.h.b16 %v981
        %v1183 = vunpack.c.l.b16 %v982
        %v1184 = vunpack.c.h.b16 %v982
        %v1185 = vunpack.c.l.b16 %v983
        %v1186 = vunpack.c.h.b16 %v983
        %v1187 = vunpack.c.l.b16 %v984
        %v1188 = vunpack.c.h.b16 %v984
        %v1189 = vpack.c.b16 %v1063, %v1061
        %v1190 = vpack.c.b16 %v1064, %v1062
        %v1191 = vpack.c.b16 %v1067, %v1065
        %v1192 = vpack.c.b16 %v1068, %v1066
        %v1193 = vpack.c.b16 %v1071, %v1069
        %v1194 = vpack.c.b16 %v1072, %v1070
        %v1195 = vpack.c.b16 %v1075, %v1073
        %v1196 = vpack.c.b16 %v1076, %v1074
        %v1197 = vpack.c.b16 %v1079, %v1077
        %v1198 = vpack.c.b16 %v1080, %v1078
        %v1199 = vpack.c.b16 %v1083, %v1081
        %v1200 = vpack.c.b16 %v1084, %v1082
        %v1201 = vpack.c.b16 %v1087, %v1085
        %v1202 = vpack.c.b16 %v1088, %v1086
        %v1203 = vpack.c.b16 %v1091, %v1089
        %v1204 = vpack.c.b16 %v1092, %v1090
        %v1205 = vpack.c.b16 %v1095, %v1093
        %v1206 = vpack.c.b16 %v1096, %v1094
        %v1207 = vpack.c.b16 %v1099, %v1097
        %v1208 = vpack.c.b16 %v1100, %v1098
        %v1209 = vpack.c.b16 %v1103, %v1101
        %v1210 = vpack.c.b16 %v1104, %v1102
        %v1211 = vpack.c.b16 %v1107, %v1105
        %v1212 = vpack.c.b16 %v1108, %v1106
        %v1213 = vpack.c.b16 %v1111, %v1109
        %v1214 = vpack.c.b16 %v1112, %v1110
        %v1215 = vpack.c.b16 %v1115, %v1113
        %v1216 = vpack.c.b16 %v1116, %v1114
        %v1217 = vpack.c.b16 %v1119, %v1117
        %v1218 = vpack.c.b16 %v1120, %v1118
        %v1219 = vpack.c.b16 %v1123, %v1121
        %v1220 = vpack.c.b16 %v1124, %v1122
        %v1221 = vpack.c.b16 %v1127, %v1125
        %v1222 = vpack.c.b16 %v1128, %v1126
        %v1223 = vpack.c.b16 %v1131, %v1129
        %v1224 = vpack.c.b16 %v1132, %v1130
        %v1225 = vpack.c.b16 %v1135, %v1133
        %v1226 = vpack.c.b16 %v1136, %v1134
        %v1227 = vpack.c.b16 %v1139, %v1137
        %v1228 = vpack.c.b16 %v1140, %v1138
        %v1229 = vpack.c.b16 %v1143, %v1141
        %v1230 = vpack.c.b16 %v1144, %v1142
        %v1231 = vpack.c.b16 %v1147, %v1145
        %v1232 = vpack.c.b16 %v1148, %v1146
        %v1233 = vpack.c.b16 %v1151, %v1149
        %v1234 = vpack.c.b16 %v1152, %v1150
        %v1235 = vpack.c.b16 %v1155, %v1153
        %v1236 = vpack.c.b16 %v1156, %v1154
        %v1237 = vpack.c.b16 %v1159, %v1157
        %v1238 = vpack.c.b16 %v1160, %v1158
        %v1239 = vpack.c.b16 %v1163, %v1161
        %v1240 = vpack.c.b16 %v1164, %v1162
        %v1241 = vpack.c.b16 %v1167, %v1165
        %v1242 = vpack.c.b16 %v1168, %v1166
        %v1243 = vpack.c.b16 %v1171, %v1169
        %v1244 = vpack.c.b16 %v1172, %v1170
        %v1245 = vpack.c.b16 %v1175, %v1173
        %v1246 = vpack.c.b16 %v1176, %v1174
        %v1247 = vpack.c.b16 %v1179, %v1177
        %v1248 = vpack.c.b16 %v1180, %v1178
        %v1249 = vpack.c.b16 %v1183, %v1181
        %v1250 = vpack.c.b16 %v1184, %v1182
        %v1251 = vpack.c.b16 %v1187, %v1185
        %v1252 = vpack.c.b16 %v1188, %v1186
        %1317 = vmatprep.subr.bf16.mxu0 %v1204
        %1318 = vmatpush1.bf16.msra.mxu0 %v1203
        %1319 = vmatprep.subr.bf16.mxu0 %v1202
        %1320 = vmatpush1.bf16.msra.mxu0 %v1201
        %1321 = vmatprep.subr.bf16.mxu0 %v1200
        %1322 = vmatpush1.bf16.msra.mxu0 %v1199
        %1323 = vmatprep.subr.bf16.mxu0 %v1198
        %1324 = vmatpush1.bf16.msra.mxu0 %v1197
        %1325 = vmatprep.subr.bf16.mxu0 %v1196
        %1326 = vmatpush1.bf16.msra.mxu0 %v1195
        %1327 = vmatprep.subr.bf16.mxu0 %v1194
        %1328 = vmatpush1.bf16.msra.mxu0 %v1193
        %1329 = vmatprep.subr.bf16.mxu0 %v1192
        %1330 = vmatpush1.bf16.msra.mxu0 %v1191
        %1331 = vmatprep.subr.bf16.mxu0 %v1190
        %1332 = vmatpush1.bf16.msra.mxu0 %v1189
        %1333 = vmatprep.subr.bf16.mxu0 %v1220
        %1334 = vmatpush2.bf16.msra.mxu0 %v1219
        %1335 = vmatprep.subr.bf16.mxu0 %v1218
        %1336 = vmatpush2.bf16.msra.mxu0 %v1217
        %1337 = vmatprep.subr.bf16.mxu0 %v1216
        %1338 = vmatpush2.bf16.msra.mxu0 %v1215
        %1339 = vmatprep.subr.bf16.mxu0 %v1214
        %1340 = vmatpush2.bf16.msra.mxu0 %v1213
        %1341 = vmatprep.subr.bf16.mxu0 %v1212
        %1342 = vmatpush2.bf16.msra.mxu0 %v1211
        %1343 = vmatprep.subr.bf16.mxu0 %v1210
        %1344 = vmatpush2.bf16.msra.mxu0 %v1209
        %1345 = vmatprep.subr.bf16.mxu0 %v1208
        %1346 = vmatpush2.bf16.msra.mxu0 %v1207
        %1347 = vmatprep.subr.bf16.mxu0 %v1206
        %1348 = vmatpush2.bf16.msra.mxu0 %v1205
        %1349 = vmatprep.mubr.bf16.mxu0 %v914
        %1350 = vmatmul.mubr.bf16.gmra.mxu0 %v913
        %v1351 = vpop.f32.mrf.mxu0
        %v1352 = vadd.f32 %v990, %v1351
        %v1353 = vpop.f32.mrf.mxu0
        %v1354 = vadd.f32 %v994, %v1353
        %v1355 = vpop.f32.mrf.mxu0
        %v1356 = vadd.f32 %v990, %v1355
        %v1357 = vpop.f32.mrf.mxu0
        %v1358 = vadd.f32 %v994, %v1357
        %1359 = vmatprep.mubr.bf16.mxu0 %v918
        %1360 = vmatmul.mubr.bf16.gmra.mxu0 %v917
        %v1361 = vpop.f32.mrf.mxu0
        %v1362 = vadd.f32 %v990, %v1361
        %v1363 = vpop.f32.mrf.mxu0
        %v1364 = vadd.f32 %v994, %v1363
        %v1365 = vpop.f32.mrf.mxu0
        %v1366 = vadd.f32 %v990, %v1365
        %v1367 = vpop.f32.mrf.mxu0
        %v1368 = vadd.f32 %v994, %v1367
        %1369 = vdwg.mxu0
        %1370 = vmatprep.subr.bf16.mxu0 %v1236
        %1371 = vmatpush1.bf16.msra.mxu0 %v1235
        %1372 = vmatprep.subr.bf16.mxu0 %v1234
        %1373 = vmatpush1.bf16.msra.mxu0 %v1233
        %1374 = vmatprep.subr.bf16.mxu0 %v1232
        %1375 = vmatpush1.bf16.msra.mxu0 %v1231
        %1376 = vmatprep.subr.bf16.mxu0 %v1230
        %1377 = vmatpush1.bf16.msra.mxu0 %v1229
        %1378 = vmatprep.subr.bf16.mxu0 %v1228
        %1379 = vmatpush1.bf16.msra.mxu0 %v1227
        %1380 = vmatprep.subr.bf16.mxu0 %v1226
        %1381 = vmatpush1.bf16.msra.mxu0 %v1225
        %1382 = vmatprep.subr.bf16.mxu0 %v1224
        %1383 = vmatpush1.bf16.msra.mxu0 %v1223
        %1384 = vmatprep.subr.bf16.mxu0 %v1222
        %1385 = vmatpush1.bf16.msra.mxu0 %v1221
        %1386 = vmatprep.subr.bf16.mxu0 %v1252
        %1387 = vmatpush2.bf16.msra.mxu0 %v1251
        %1388 = vmatprep.subr.bf16.mxu0 %v1250
        %1389 = vmatpush2.bf16.msra.mxu0 %v1249
        %1390 = vmatprep.subr.bf16.mxu0 %v1248
        %1391 = vmatpush2.bf16.msra.mxu0 %v1247
        %1392 = vmatprep.subr.bf16.mxu0 %v1246
        %1393 = vmatpush2.bf16.msra.mxu0 %v1245
        %1394 = vmatprep.subr.bf16.mxu0 %v1244
        %1395 = vmatpush2.bf16.msra.mxu0 %v1243
        %1396 = vmatprep.subr.bf16.mxu0 %v1242
        %1397 = vmatpush2.bf16.msra.mxu0 %v1241
        %1398 = vmatprep.subr.bf16.mxu0 %v1240
        %1399 = vmatpush2.bf16.msra.mxu0 %v1239
        %1400 = vmatprep.subr.bf16.mxu0 %v1238
        %1401 = vmatpush2.bf16.msra.mxu0 %v1237
        %1402 = vmatprep.mubr.bf16.mxu0 %v916
        %1403 = vmatmul.mubr.bf16.gmra.mxu0 %v915
        %v1404 = vpop.f32.mrf.mxu0
        %v1405 = vadd.f32 %v1352, %v1404
        %v1406 = vpop.f32.mrf.mxu0
        %v1407 = vadd.f32 %v1354, %v1406
        %v1408 = vpop.f32.mrf.mxu0
        %v1409 = vadd.f32 %v1356, %v1408
        %v1410 = vpop.f32.mrf.mxu0
        %v1411 = vadd.f32 %v1358, %v1410
        %1412 = vmatprep.mubr.bf16.mxu0 %v920
        %1413 = vmatmul.mubr.bf16.gmra.mxu0 %v919
        %v1414 = vpop.f32.mrf.mxu0
        %v1415 = vadd.f32 %v1362, %v1414
        %v1416 = vpop.f32.mrf.mxu0
        %v1417 = vadd.f32 %v1364, %v1416
        %v1418 = vpop.f32.mrf.mxu0
        %v1419 = vadd.f32 %v1366, %v1418
        %v1420 = vpop.f32.mrf.mxu0
        %v1421 = vadd.f32 %v1368, %v1420
        %1422 = vdwg.mxu0
        %v1423 = vmax.f32 %v1405, 0.0
        %v1424 = vmax.f32 %v1407, 0.0
        %v1425 = vmax.f32 %v1409, 0.0
        %v1426 = vmax.f32 %v1411, 0.0
        %v1427 = vmax.f32 %v1415, 0.0
        %v1428 = vmax.f32 %v1417, 0.0
        %v1429 = vmax.f32 %v1419, 0.0
        %v1430 = vmax.f32 %v1421, 0.0
        %v1431 = vpack.c.bf16 %v1425, %v1423
        %v1432 = vpack.c.bf16 %v1426, %v1424
        %v1433 = vpack.c.bf16 %v1429, %v1427
        %v1434 = vpack.c.bf16 %v1430, %v1428
        %v1435 = vld [vmem:[#allocation10] sm:$0xf]
        %v1436 = vld [vmem:[#allocation10 + $0x4] sm:$0xf]
        %v1437 = vld [vmem:[#allocation10 + $0x8] sm:$0xf]
        %v1438 = vld [vmem:[#allocation10 + $0xc] sm:$0xf]
        %v1439 = vld [vmem:[#allocation10 + $0x10] sm:$0xf]
        %v1440 = vld [vmem:[#allocation10 + $0x14] sm:$0xf]
        %v1441 = vld [vmem:[#allocation10 + $0x18] sm:$0xf]
        %v1442 = vld [vmem:[#allocation10 + $0x1c] sm:$0xf]
        %v1443 = vld [vmem:[#allocation10 + $0x20] sm:$0xf]
        %v1444 = vld [vmem:[#allocation10 + $0x24] sm:$0xf]
        %v1445 = vld [vmem:[#allocation10 + $0x28] sm:$0xf]
        %v1446 = vld [vmem:[#allocation10 + $0x2c] sm:$0xf]
        %v1447 = vld [vmem:[#allocation10 + $0x30] sm:$0xf]
        %v1448 = vld [vmem:[#allocation10 + $0x34] sm:$0xf]
        %v1449 = vld [vmem:[#allocation10 + $0x38] sm:$0xf]
        %v1450 = vld [vmem:[#allocation10 + $0x3c] sm:$0xf]
        %v1451 = vld [vmem:[#allocation10 + $0x40] sm:$0xf]
        %v1452 = vld [vmem:[#allocation10 + $0x44] sm:$0xf]
        %v1453 = vld [vmem:[#allocation10 + $0x48] sm:$0xf]
        %v1454 = vld [vmem:[#allocation10 + $0x4c] sm:$0xf]
        %v1455 = vld [vmem:[#allocation10 + $0x50] sm:$0xf]
        %v1456 = vld [vmem:[#allocation10 + $0x54] sm:$0xf]
        %v1457 = vld [vmem:[#allocation10 + $0x58] sm:$0xf]
        %v1458 = vld [vmem:[#allocation10 + $0x5c] sm:$0xf]
        %v1459 = vld [vmem:[#allocation10 + $0x60] sm:$0xf]
        %v1460 = vld [vmem:[#allocation10 + $0x64] sm:$0xf]
        %v1461 = vld [vmem:[#allocation10 + $0x68] sm:$0xf]
        %v1462 = vld [vmem:[#allocation10 + $0x6c] sm:$0xf]
        %v1463 = vld [vmem:[#allocation10 + $0x70] sm:$0xf]
        %v1464 = vld [vmem:[#allocation10 + $0x74] sm:$0xf]
        %v1465 = vld [vmem:[#allocation10 + $0x78] sm:$0xf]
        %v1466 = vld [vmem:[#allocation10 + $0x7c] sm:$0xf]
        %v1467 = vld [vmem:[%s6] sm:$0x1]
        %v1469 = vlaneseq
        %v1470 = vshrl.u32 %v1469, 7
        %v1471 = vsub.s32 0, %v1470
        %v1472 = vrot.slane %v1467, %v1471
        %v1506 = vunpack.c.l.b16 %v1435
        %v1507 = vunpack.c.l.b16 %v1436
        %v1508 = vunpack.c.l.b16 %v1437
        %v1509 = vunpack.c.l.b16 %v1438
        %v1510 = vunpack.c.l.b16 %v1439
        %v1511 = vunpack.c.l.b16 %v1440
        %v1512 = vunpack.c.l.b16 %v1441
        %v1513 = vunpack.c.l.b16 %v1442
        %v1514 = vunpack.c.l.b16 %v1443
        %v1515 = vunpack.c.l.b16 %v1444
        %v1516 = vunpack.c.l.b16 %v1445
        %v1517 = vunpack.c.l.b16 %v1446
        %v1518 = vunpack.c.l.b16 %v1447
        %v1519 = vunpack.c.l.b16 %v1448
        %v1520 = vunpack.c.l.b16 %v1449
        %v1521 = vunpack.c.l.b16 %v1450
        %v1522 = vunpack.c.l.b16 %v1451
        %v1523 = vunpack.c.l.b16 %v1452
        %v1524 = vunpack.c.l.b16 %v1453
        %v1525 = vunpack.c.l.b16 %v1454
        %v1526 = vunpack.c.l.b16 %v1455
        %v1527 = vunpack.c.l.b16 %v1456
        %v1528 = vunpack.c.l.b16 %v1457
        %v1529 = vunpack.c.l.b16 %v1458
        %v1530 = vunpack.c.l.b16 %v1459
        %v1531 = vunpack.c.l.b16 %v1460
        %v1532 = vunpack.c.l.b16 %v1461
        %v1533 = vunpack.c.l.b16 %v1462
        %v1534 = vunpack.c.l.b16 %v1463
        %v1535 = vunpack.c.l.b16 %v1464
        %v1536 = vunpack.c.l.b16 %v1465
        %v1537 = vunpack.c.l.b16 %v1466
        %v1538 = vpack.c.b16 %v1507, %v1506
        %v1539 = vpack.c.b16 %v1509, %v1508
        %v1540 = vpack.c.b16 %v1511, %v1510
        %v1541 = vpack.c.b16 %v1513, %v1512
        %v1542 = vpack.c.b16 %v1515, %v1514
        %v1543 = vpack.c.b16 %v1517, %v1516
        %v1544 = vpack.c.b16 %v1519, %v1518
        %v1545 = vpack.c.b16 %v1521, %v1520
        %v1546 = vpack.c.b16 %v1523, %v1522
        %v1547 = vpack.c.b16 %v1525, %v1524
        %v1548 = vpack.c.b16 %v1527, %v1526
        %v1549 = vpack.c.b16 %v1529, %v1528
        %v1550 = vpack.c.b16 %v1531, %v1530
        %v1551 = vpack.c.b16 %v1533, %v1532
        %v1552 = vpack.c.b16 %v1535, %v1534
        %v1553 = vpack.c.b16 %v1537, %v1536
        %1570 = vmatprep.subr.bf16.mxu0 0
        %1571 = vmatpush1.bf16.msra.mxu0 %v1545
        %1572 = vmatprep.subr.bf16.mxu0 0
        %1573 = vmatpush1.bf16.msra.mxu0 %v1544
        %1574 = vmatprep.subr.bf16.mxu0 0
        %1575 = vmatpush1.bf16.msra.mxu0 %v1543
        %1576 = vmatprep.subr.bf16.mxu0 0
        %1577 = vmatpush1.bf16.msra.mxu0 %v1542
        %1578 = vmatprep.subr.bf16.mxu0 0
        %1579 = vmatpush1.bf16.msra.mxu0 %v1541
        %1580 = vmatprep.subr.bf16.mxu0 0
        %1581 = vmatpush1.bf16.msra.mxu0 %v1540
        %1582 = vmatprep.subr.bf16.mxu0 0
        %1583 = vmatpush1.bf16.msra.mxu0 %v1539
        %1584 = vmatprep.subr.bf16.mxu0 0
        %1585 = vmatpush1.bf16.msra.mxu0 %v1538
        %1586 = vmatprep.subr.bf16.mxu0 0
        %1587 = vmatpush2.bf16.msra.mxu0 %v1553
        %1588 = vmatprep.subr.bf16.mxu0 0
        %1589 = vmatpush2.bf16.msra.mxu0 %v1552
        %1590 = vmatprep.subr.bf16.mxu0 0
        %1591 = vmatpush2.bf16.msra.mxu0 %v1551
        %1592 = vmatprep.subr.bf16.mxu0 0
        %1593 = vmatpush2.bf16.msra.mxu0 %v1550
        %1594 = vmatprep.subr.bf16.mxu0 0
        %1595 = vmatpush2.bf16.msra.mxu0 %v1549
        %1596 = vmatprep.subr.bf16.mxu0 0
        %1597 = vmatpush2.bf16.msra.mxu0 %v1548
        %1598 = vmatprep.subr.bf16.mxu0 0
        %1599 = vmatpush2.bf16.msra.mxu0 %v1547
        %1600 = vmatprep.subr.bf16.mxu0 0
        %1601 = vmatpush2.bf16.msra.mxu0 %v1546
        %1602 = vmatprep.mubr.bf16.mxu0 %v1432
        %1603 = vmatmul.mubr.bf16.gmra.mxu0 %v1431
        %v1604 = vpop.f32.mrf.mxu0
        %v1605 = vadd.f32 %v1472, %v1604
        %v1606 = vpop.f32.mrf.mxu0
        %v1607 = vpop.f32.mrf.mxu0
        %v1608 = vadd.f32 %v1472, %v1607
        %v1609 = vpop.f32.mrf.mxu0
        %1610 = vmatprep.mubr.bf16.mxu0 %v1434
        %1611 = vmatmul.mubr.bf16.gmra.mxu0 %v1433
        %v1612 = vpop.f32.mrf.mxu0
        %v1613 = vadd.f32 %v1472, %v1612
        %v1614 = vpop.f32.mrf.mxu0
        %v1615 = vpop.f32.mrf.mxu0
        %v1616 = vadd.f32 %v1472, %v1615
        %v1617 = vpop.f32.mrf.mxu0
        %1618 = vdwg.mxu0
        %1619 = vst [vmem:[%s360] sm:$0xff] %v1605
        %1620 = vst [vmem:[%s360 + $0x8] sm:$0xff] %v1608
        %1621 = vst [vmem:[%s360 + $0x10] sm:$0xff] %v1613
        %1622 = vst [vmem:[%s360 + $0x18] sm:$0xff] %v1616
        %s1623 = sand.u32 %s186, 1
        %s1624 = scalar_lea.sflag [#allocation4], %s1623
        %s1625 = sand.u32 %s186, 1
        %s1626 = smul.addr %s1625, 32
        %s1627 = scalar_lea.vmem [#allocation11], %s1626
        // Predicated region
        $region69: #{tpu_custom_call.1} parent=47 // pred_check
          %p1628 = pneg %p196
        $region70: #{tpu_custom_call.1} parent=47 // pred_check_branch
          %1630 = sbr.rel (%p1628) target = $region72
        $region71: #{tpu_custom_call.1} parent=47 // pred_region
          %s1631 = smul.u32 4, %s26
          %s1632 = ssub.s32 10, %s1631
          %p1633 = scmp.lt.s32.totalorder %s1632, 4
          %s1634 = scalar_select %p1633, %s1632, 4
          %s1635 = smul.u32 128, %s1634
          %s1637 = ssub.s32 512, %s1635
          %1638 = vsyncadd %s1624, %s1637
          %p1639 = scmp.ne.s32.totalorder 0, %s1635
          %s1640 = smul.addr %s1631, 128
          %s1641 = scalar_lea.hbm %s7, %s1640
          %s1642 = smul.u32 8, %s1634
          %s1643 = sshll.u32 %s1627, 4
          %s1644 = int_to_ptr.vmem [resolvable:$true] %s1643
          %s1645 = sshll.u32 %s1642, 4
          %1649 = dma.vmem_to_hbm [thread:$0]  (%p1639), %s1644, %s1645, %s1641, %s1624, 128, 128, 8
        $region72: #{tpu_custom_call.1} parent=47 // pred_fallthru
          _
      $region48: #{tpu_custom_call.1} parent=5 // pred_fallthru
        _
      %p1650 = scmp.le.s32.totalorder 2, %s21
      // Predicated region
      $region73: #{tpu_custom_call.1} parent=5 // pred_check
        %p1651 = pneg %p1650
      $region74: #{tpu_custom_call.1} parent=5 // pred_check_branch
        %1653 = sbr.rel (%p1651) target = $region76
      $region75: #{tpu_custom_call.1} parent=5 // pred_region
        %s1654 = ssub.s32 %s21, 2
        // Predicated region
        $region77: #{tpu_custom_call.1} parent=75 // pred_check
          %p1655 = pneg %p202
        $region78: #{tpu_custom_call.1} parent=75 // pred_check_branch
          %1657 = sbr.rel (%p1655) target = $region80
        $region79: #{tpu_custom_call.1} parent=75 // pred_region
          %s1658 = sand.u32 %s187, 1
          %s1659 = scalar_lea.sflag [#allocation4], %s1658
          %s1660 = sand.u32 %s187, 1
          %s1661 = smul.addr %s1660, 32
          %s1662 = scalar_lea.vmem [#allocation11], %s1661
          %1663 = dma.done %s1659, 512
        $region80: #{tpu_custom_call.1} parent=75 // pred_fallthru
          _
      $region76: #{tpu_custom_call.1} parent=5 // pred_fallthru
        _
    $region6: #{tpu_custom_call.1} parent=1 // loop_footer
      %s25 = sadd.s32 1, %s21
    $region7: #{tpu_custom_call.1} parent=1 // loop_footer_branch
      %20 = sbr.rel target = $region3
    $region8: #{tpu_custom_call.1} parent=1 // loop_exit
      _
    %1664 = vsyncpa [#allocation3], 1
    %s1665 = scalar_lea.sflag [#allocation3], 1
    %1666 = vsyncpa %s1665, 1
    %1667 = vsyncpa [#allocation6], 1
    %1668 = vsyncpa [#allocation9], 1
    %1669 = vsyncpa [#allocation4], 1
    %s1670 = scalar_lea.sflag [#allocation4], 1
    %1671 = vsyncpa %s1670, 1

</llo_original>
